<compile_context>
chip_gen: v7x
topology: tpu7x:2x2x1
jax: 0.10.0
libtpu: 0.0.40
codegen_flags: <defaults>
</compile_context>

<pallas_src>
import functools

import jax
import jax.numpy as jnp
from jax.experimental import pallas as pl
from jax.experimental.pallas import tpu as pltpu


def predictor_kernel(x_ref, w_ih_e_ref, w_hh_e_ref, b_e_ref,
                     w_ih_d_ref, w_hh_d_ref, b_d_ref,
                     w_head_ref, b_head_ref, out_ref, h_hist_ref):
    T = x_ref.shape[0]
    B = x_ref.shape[1]
    H = w_hh_e_ref.shape[0]

    # ---- encoder input projection hoisted out of the recurrence ----
    # K == 1, so it is a VPU broadcast-multiply: (T,B,1)*(1,1,4H)+(1,1,4H).
    x_proj_e = x_ref[...] * w_ih_e_ref[...][None] + b_e_ref[...][None]

    def lstm_cell(gates, c):
        # sigmoid(x) = 0.5*(1 + tanh(0.5*x)): one full-vreg tanh covers the
        # i/f/o gates (no exp, no divide on the recurrent chain).
        sig = 0.5 * jnp.tanh(0.5 * gates) + 0.5
        i = sig[:, 0 * H:1 * H]
        f = sig[:, 1 * H:2 * H]
        o = sig[:, 3 * H:4 * H]
        g = jnp.tanh(gates[:, 2 * H:3 * H])
        c_new = f * c + i * g
        h_new = o * jnp.tanh(c_new)
        return h_new, c_new

    w_hh_e = w_hh_e_ref[...]
    h = jnp.zeros((B, H), jnp.float32)
    c = jnp.zeros((B, H), jnp.float32)
    # Fully unrolled (T static & small): only h @ W_hh + the cell remain on
    # the serial dependency chain; x_proj_e[t] is a free static slice.
    for t in range(T):
        gates = x_proj_e[t] + jnp.dot(h, w_hh_e,
                                      preferred_element_type=jnp.float32)
        h, c = lstm_cell(gates, c)
    h_enc = h

    # ---- decoder: its input is the SAME vector h_enc at every step, so the
    #      input projection is computed once outside the loop ----
    xproj_d = (jnp.dot(h_enc, w_ih_d_ref[...],
                       preferred_element_type=jnp.float32) + b_d_ref[...])
    w_hh_d = w_hh_d_ref[...]

    h = jnp.zeros((B, H), jnp.float32)
    c = jnp.zeros((B, H), jnp.float32)
    for t in range(T):
        gates = xproj_d + jnp.dot(h, w_hh_d,
                                  preferred_element_type=jnp.float32)
        h, c = lstm_cell(gates, c)
        h_hist_ref[t] = h          # static store to VMEM scratch, off-chain

    # ---- deferred head projection + single full-block output store ----
    w_head = w_head_ref[...]       # (1, H)
    y = (jnp.sum(h_hist_ref[...] * w_head[None], axis=-1, keepdims=True)
         + b_head_ref[...][None])  # (T, B, 1)
    out_ref[...] = y.astype(out_ref.dtype)


def init_params(key, input_size, hidden_size):
    """PyTorch-style U(-1/sqrt(H), 1/sqrt(H)) init in the kernel's layout."""
    H = hidden_size
    bound = 1.0 / jnp.sqrt(jnp.float32(H))
    keys = jax.random.split(key, 12)
    u = lambda k, shape: jax.random.uniform(
        k, shape, jnp.float32, minval=-bound, maxval=bound)
    return dict(
        w_ih_e=u(keys[0], (input_size, 4 * H)),
        w_hh_e=u(keys[1], (H, 4 * H)),
        b_e=u(keys[2], (1, 4 * H)) + u(keys[3], (1, 4 * H)),   # b_ih + b_hh
        w_ih_d=u(keys[4], (H, 4 * H)),
        w_hh_d=u(keys[5], (H, 4 * H)),
        b_d=u(keys[6], (1, 4 * H)) + u(keys[7], (1, 4 * H)),
        w_head=u(keys[8], (input_size, H)),                    # (1, H)
        b_head=u(keys[9], (1, input_size)),                    # (1, 1)
    )


@functools.partial(jax.jit, static_argnames=())
def predictor_forward(x, params):
    """x: (B, T) float32  ->  (B, T, 1) float32 (matches PyTorch Predictor)."""
    B, T = x.shape
    H = params["w_hh_e"].shape[0]
    x_tm = jnp.transpose(x, (1, 0))[:, :, None]          # (T, B, 1) time-major

    TB = B                      # one batch tile at this size; larger batches
    grid = (pl.cdiv(B, TB),)    # tile & shard across the 2 TCs on v7x.
    full = lambda shape: pl.BlockSpec(shape, lambda b: (0,) * len(shape))

    out_tm = pl.pallas_call(
        predictor_kernel,
        out_shape=jax.ShapeDtypeStruct((T, B, 1), jnp.float32),
        grid_spec=pltpu.PrefetchScalarGridSpec(
            num_scalar_prefetch=0,
            grid=grid,
            in_specs=[
                pl.BlockSpec((T, TB, 1), lambda b: (0, b, 0)),   # x
                full((1, 4 * H)),                                # w_ih_e
                full((H, 4 * H)),                                # w_hh_e
                full((1, 4 * H)),                                # b_e
                full((H, 4 * H)),                                # w_ih_d
                full((H, 4 * H)),                                # w_hh_d
                full((1, 4 * H)),                                # b_d
                full((1, H)),                                    # w_head
                full((1, 1)),                                    # b_head
            ],
            out_specs=pl.BlockSpec((T, TB, 1), lambda b: (0, b, 0)),
            # (T, TB, H) f32 decoder-hidden history; tiny here — keep it
            # under v7x's 64 MiB VMEM budget if T/B/H ever scale up.
            scratch_shapes=[pltpu.VMEM((T, TB, H), jnp.float32)],
        ),
        compiler_params=pltpu.CompilerParams(
            dimension_semantics=("parallel",)),
    )(x_tm,
      params["w_ih_e"], params["w_hh_e"], params["b_e"],
      params["w_ih_d"], params["w_hh_d"], params["b_d"],
      params["w_head"], params["b_head"])
    return jnp.transpose(out_tm, (1, 0, 2))               # (B, T, 1)


def predictor_reference(x, params):
    """Pure-JAX reference with standard LSTM math (correctness check)."""
    B, T = x.shape
    H = params["w_hh_e"].shape[0]

    def cell(gates, c):
        i = jax.nn.sigmoid(gates[:, 0 * H:1 * H])
        f = jax.nn.sigmoid(gates[:, 1 * H:2 * H])
        g = jnp.tanh(gates[:, 2 * H:3 * H])
        o = jax.nn.sigmoid(gates[:, 3 * H:4 * H])
        c_new = f * c + i * g
        return o * jnp.tanh(c_new), c_new

    h = jnp.zeros((B, H), jnp.float32)
    c = jnp.zeros((B, H), jnp.float32)
    for t in range(T):
        x_t = x[:, t:t + 1]
        gates = x_t @ params["w_ih_e"] + h @ params["w_hh_e"] + params["b_e"]
        h, c = cell(gates, c)
    h_enc = h

    h = jnp.zeros((B, H), jnp.float32)
    c = jnp.zeros((B, H), jnp.float32)
    ys = []
    for t in range(T):
        gates = (h_enc @ params["w_ih_d"] + params["b_d"]
                 + h @ params["w_hh_d"])
        h, c = cell(gates, c)
        ys.append(h @ params["w_head"].T + params["b_head"])
    return jnp.stack(ys, axis=1)                           # (B, T, 1)


if __name__ == "__main__":
    # Small shapes consistent with the module: batch=2, seq=8, hidden=32,
    # input_size=1 (forced by x.unsqueeze(dim=2) in the PyTorch forward).
    B, T, H, INPUT_SIZE = 2, 8, 32, 1

    key = jax.random.PRNGKey(0)
    k_x, k_p = jax.random.split(key)
    x = jax.random.normal(k_x, (B, T), jnp.float32)
    params = init_params(k_p, INPUT_SIZE, H)

    out = predictor_forward(x, params)
    out = jax.block_until_ready(out)
    assert out.shape == (B, T, INPUT_SIZE), out.shape

    ref = predictor_reference(x, params)
    max_err = float(jnp.max(jnp.abs(out - ref)))
    assert jnp.allclose(out, ref, atol=1e-4, rtol=1e-4), max_err

    print("KERNEL_OK")
</pallas_src>

<mosaic_0001>
module attributes {stable_mosaic.version = 11 : i64} {
  func.func @predictor_kernel(%arg0: i32, %arg1: memref<8x2x1xf32, #tpu.memory_space<vmem>>, %arg2: memref<1x128xf32, #tpu.memory_space<vmem>>, %arg3: memref<32x128xf32, #tpu.memory_space<vmem>>, %arg4: memref<1x128xf32, #tpu.memory_space<vmem>>, %arg5: memref<32x128xf32, #tpu.memory_space<vmem>>, %arg6: memref<32x128xf32, #tpu.memory_space<vmem>>, %arg7: memref<1x128xf32, #tpu.memory_space<vmem>>, %arg8: memref<1x32xf32, #tpu.memory_space<vmem>>, %arg9: memref<1x1xf32, #tpu.memory_space<vmem>>, %arg10: memref<8x2x1xf32, #tpu.memory_space<vmem>>, %arg11: memref<8x2x32xf32, #tpu.memory_space<vmem>>) attributes {dimension_semantics = [#tpu.dimension_semantics<parallel>], iteration_bounds = array<i64: 1>, scalar_prefetch = 0 : i64, scratch_operands = 1 : i64, tpu.core_type = #tpu.core_type<tc>, window_params = [{transform_indices = @transform_0, window_bounds = array<i64: 8, 2, 1>}, {pipeline_mode = #tpu.pipeline_mode<synchronous>, transform_indices = @transform_1, window_bounds = array<i64: 1, 128>}, {pipeline_mode = #tpu.pipeline_mode<synchronous>, transform_indices = @transform_2, window_bounds = array<i64: 32, 128>}, {pipeline_mode = #tpu.pipeline_mode<synchronous>, transform_indices = @transform_3, window_bounds = array<i64: 1, 128>}, {pipeline_mode = #tpu.pipeline_mode<synchronous>, transform_indices = @transform_4, window_bounds = array<i64: 32, 128>}, {pipeline_mode = #tpu.pipeline_mode<synchronous>, transform_indices = @transform_5, window_bounds = array<i64: 32, 128>}, {pipeline_mode = #tpu.pipeline_mode<synchronous>, transform_indices = @transform_6, window_bounds = array<i64: 1, 128>}, {pipeline_mode = #tpu.pipeline_mode<synchronous>, transform_indices = @transform_7, window_bounds = array<i64: 1, 32>}, {pipeline_mode = #tpu.pipeline_mode<synchronous>, transform_indices = @transform_8, window_bounds = array<i64: 1, 1>}, {transform_indices = @transform_9, window_bounds = array<i64: 8, 2, 1>}]} {
    %c0 = arith.constant 0 : index
    %c0_0 = arith.constant 0 : index
    %c0_1 = arith.constant 0 : index
    %0 = vector.load %arg1[%c0, %c0_0, %c0_1] : memref<8x2x1xf32, #tpu.memory_space<vmem>>, vector<8x2x1xf32>
    %c0_2 = arith.constant 0 : index
    %c0_3 = arith.constant 0 : index
    %1 = vector.load %arg2[%c0_2, %c0_3] : memref<1x128xf32, #tpu.memory_space<vmem>>, vector<1x128xf32>
    %2 = vector.shape_cast %1 : vector<1x128xf32> to vector<1x1x128xf32>
    %3 = vector.broadcast %0 : vector<8x2x1xf32> to vector<8x2x128xf32>
    %4 = vector.broadcast %2 : vector<1x1x128xf32> to vector<8x2x128xf32>
    %5 = arith.mulf %3, %4 : vector<8x2x128xf32>
    %c0_4 = arith.constant 0 : index
    %c0_5 = arith.constant 0 : index
    %6 = vector.load %arg4[%c0_4, %c0_5] : memref<1x128xf32, #tpu.memory_space<vmem>>, vector<1x128xf32>
    %7 = vector.shape_cast %6 : vector<1x128xf32> to vector<1x1x128xf32>
    %8 = vector.broadcast %7 : vector<1x1x128xf32> to vector<8x2x128xf32>
    %9 = arith.addf %5, %8 : vector<8x2x128xf32>
    %c0_6 = arith.constant 0 : index
    %c0_7 = arith.constant 0 : index
    %10 = vector.load %arg3[%c0_6, %c0_7] : memref<32x128xf32, #tpu.memory_space<vmem>>, vector<32x128xf32>
    %cst = arith.constant 0.000000e+00 : f32
    %11 = vector.broadcast %cst : f32 to vector<2x32xf32>
    %cst_8 = arith.constant 0.000000e+00 : f32
    %12 = vector.broadcast %cst_8 : f32 to vector<2x32xf32>
    %13 = vector.extract_strided_slice %9 {offsets = [0, 0, 0], sizes = [1, 2, 128], strides = [1, 1, 1]} : vector<8x2x128xf32> to vector<1x2x128xf32>
    %14 = vector.shape_cast %13 : vector<1x2x128xf32> to vector<2x128xf32>
    %cst_9 = arith.constant dense<0.000000e+00> : vector<2x128xf32>
    %15 = tpu.matmul %11, %10, %cst_9 {dimension_numbers = #tpu.dot_dimension_numbers<[1], [0], [0], [1], [0, 0, 1, 1], [], []>} : vector<2x32xf32>, vector<32x128xf32>, vector<2x128xf32> -> vector<2x128xf32>
    %16 = arith.addf %14, %15 : vector<2x128xf32>
    %cst_10 = arith.constant 5.000000e-01 : f32
    %17 = vector.broadcast %cst_10 : f32 to vector<2x128xf32>
    %18 = arith.mulf %17, %16 : vector<2x128xf32>
    %19 = math.tanh %18 : vector<2x128xf32>
    %cst_11 = arith.constant 5.000000e-01 : f32
    %20 = vector.broadcast %cst_11 : f32 to vector<2x128xf32>
    %21 = arith.mulf %20, %19 : vector<2x128xf32>
    %cst_12 = arith.constant 5.000000e-01 : f32
    %22 = vector.broadcast %cst_12 : f32 to vector<2x128xf32>
    %23 = arith.addf %21, %22 : vector<2x128xf32>
    %24 = vector.extract_strided_slice %23 {offsets = [0, 0], sizes = [2, 32], strides = [1, 1]} : vector<2x128xf32> to vector<2x32xf32>
    %25 = vector.extract_strided_slice %23 {offsets = [0, 32], sizes = [2, 32], strides = [1, 1]} : vector<2x128xf32> to vector<2x32xf32>
    %26 = vector.extract_strided_slice %23 {offsets = [0, 96], sizes = [2, 32], strides = [1, 1]} : vector<2x128xf32> to vector<2x32xf32>
    %27 = vector.extract_strided_slice %16 {offsets = [0, 64], sizes = [2, 32], strides = [1, 1]} : vector<2x128xf32> to vector<2x32xf32>
    %28 = math.tanh %27 : vector<2x32xf32>
    %29 = arith.mulf %25, %12 : vector<2x32xf32>
    %30 = arith.mulf %24, %28 : vector<2x32xf32>
    %31 = arith.addf %29, %30 : vector<2x32xf32>
    %32 = math.tanh %31 : vector<2x32xf32>
    %33 = arith.mulf %26, %32 : vector<2x32xf32>
    %34 = vector.extract_strided_slice %9 {offsets = [1, 0, 0], sizes = [1, 2, 128], strides = [1, 1, 1]} : vector<8x2x128xf32> to vector<1x2x128xf32>
    %35 = vector.shape_cast %34 : vector<1x2x128xf32> to vector<2x128xf32>
    %cst_13 = arith.constant dense<0.000000e+00> : vector<2x128xf32>
    %36 = tpu.matmul %33, %10, %cst_13 {dimension_numbers = #tpu.dot_dimension_numbers<[1], [0], [0], [1], [0, 0, 1, 1], [], []>} : vector<2x32xf32>, vector<32x128xf32>, vector<2x128xf32> -> vector<2x128xf32>
    %37 = arith.addf %35, %36 : vector<2x128xf32>
    %cst_14 = arith.constant 5.000000e-01 : f32
    %38 = vector.broadcast %cst_14 : f32 to vector<2x128xf32>
    %39 = arith.mulf %38, %37 : vector<2x128xf32>
    %40 = math.tanh %39 : vector<2x128xf32>
    %cst_15 = arith.constant 5.000000e-01 : f32
    %41 = vector.broadcast %cst_15 : f32 to vector<2x128xf32>
    %42 = arith.mulf %41, %40 : vector<2x128xf32>
    %cst_16 = arith.constant 5.000000e-01 : f32
    %43 = vector.broadcast %cst_16 : f32 to vector<2x128xf32>
    %44 = arith.addf %42, %43 : vector<2x128xf32>
    %45 = vector.extract_strided_slice %44 {offsets = [0, 0], sizes = [2, 32], strides = [1, 1]} : vector<2x128xf32> to vector<2x32xf32>
    %46 = vector.extract_strided_slice %44 {offsets = [0, 32], sizes = [2, 32], strides = [1, 1]} : vector<2x128xf32> to vector<2x32xf32>
    %47 = vector.extract_strided_slice %44 {offsets = [0, 96], sizes = [2, 32], strides = [1, 1]} : vector<2x128xf32> to vector<2x32xf32>
    %48 = vector.extract_strided_slice %37 {offsets = [0, 64], sizes = [2, 32], strides = [1, 1]} : vector<2x128xf32> to vector<2x32xf32>
    %49 = math.tanh %48 : vector<2x32xf32>
    %50 = arith.mulf %46, %31 : vector<2x32xf32>
    %51 = arith.mulf %45, %49 : vector<2x32xf32>
    %52 = arith.addf %50, %51 : vector<2x32xf32>
    %53 = math.tanh %52 : vector<2x32xf32>
    %54 = arith.mulf %47, %53 : vector<2x32xf32>
    %55 = vector.extract_strided_slice %9 {offsets = [2, 0, 0], sizes = [1, 2, 128], strides = [1, 1, 1]} : vector<8x2x128xf32> to vector<1x2x128xf32>
    %56 = vector.shape_cast %55 : vector<1x2x128xf32> to vector<2x128xf32>
    %cst_17 = arith.constant dense<0.000000e+00> : vector<2x128xf32>
    %57 = tpu.matmul %54, %10, %cst_17 {dimension_numbers = #tpu.dot_dimension_numbers<[1], [0], [0], [1], [0, 0, 1, 1], [], []>} : vector<2x32xf32>, vector<32x128xf32>, vector<2x128xf32> -> vector<2x128xf32>
    %58 = arith.addf %56, %57 : vector<2x128xf32>
    %cst_18 = arith.constant 5.000000e-01 : f32
    %59 = vector.broadcast %cst_18 : f32 to vector<2x128xf32>
    %60 = arith.mulf %59, %58 : vector<2x128xf32>
    %61 = math.tanh %60 : vector<2x128xf32>
    %cst_19 = arith.constant 5.000000e-01 : f32
    %62 = vector.broadcast %cst_19 : f32 to vector<2x128xf32>
    %63 = arith.mulf %62, %61 : vector<2x128xf32>
    %cst_20 = arith.constant 5.000000e-01 : f32
    %64 = vector.broadcast %cst_20 : f32 to vector<2x128xf32>
    %65 = arith.addf %63, %64 : vector<2x128xf32>
    %66 = vector.extract_strided_slice %65 {offsets = [0, 0], sizes = [2, 32], strides = [1, 1]} : vector<2x128xf32> to vector<2x32xf32>
    %67 = vector.extract_strided_slice %65 {offsets = [0, 32], sizes = [2, 32], strides = [1, 1]} : vector<2x128xf32> to vector<2x32xf32>
    %68 = vector.extract_strided_slice %65 {offsets = [0, 96], sizes = [2, 32], strides = [1, 1]} : vector<2x128xf32> to vector<2x32xf32>
    %69 = vector.extract_strided_slice %58 {offsets = [0, 64], sizes = [2, 32], strides = [1, 1]} : vector<2x128xf32> to vector<2x32xf32>
    %70 = math.tanh %69 : vector<2x32xf32>
    %71 = arith.mulf %67, %52 : vector<2x32xf32>
    %72 = arith.mulf %66, %70 : vector<2x32xf32>
    %73 = arith.addf %71, %72 : vector<2x32xf32>
    %74 = math.tanh %73 : vector<2x32xf32>
    %75 = arith.mulf %68, %74 : vector<2x32xf32>
    %76 = vector.extract_strided_slice %9 {offsets = [3, 0, 0], sizes = [1, 2, 128], strides = [1, 1, 1]} : vector<8x2x128xf32> to vector<1x2x128xf32>
    %77 = vector.shape_cast %76 : vector<1x2x128xf32> to vector<2x128xf32>
    %cst_21 = arith.constant dense<0.000000e+00> : vector<2x128xf32>
    %78 = tpu.matmul %75, %10, %cst_21 {dimension_numbers = #tpu.dot_dimension_numbers<[1], [0], [0], [1], [0, 0, 1, 1], [], []>} : vector<2x32xf32>, vector<32x128xf32>, vector<2x128xf32> -> vector<2x128xf32>
    %79 = arith.addf %77, %78 : vector<2x128xf32>
    %cst_22 = arith.constant 5.000000e-01 : f32
    %80 = vector.broadcast %cst_22 : f32 to vector<2x128xf32>
    %81 = arith.mulf %80, %79 : vector<2x128xf32>
    %82 = math.tanh %81 : vector<2x128xf32>
    %cst_23 = arith.constant 5.000000e-01 : f32
    %83 = vector.broadcast %cst_23 : f32 to vector<2x128xf32>
    %84 = arith.mulf %83, %82 : vector<2x128xf32>
    %cst_24 = arith.constant 5.000000e-01 : f32
    %85 = vector.broadcast %cst_24 : f32 to vector<2x128xf32>
    %86 = arith.addf %84, %85 : vector<2x128xf32>
    %87 = vector.extract_strided_slice %86 {offsets = [0, 0], sizes = [2, 32], strides = [1, 1]} : vector<2x128xf32> to vector<2x32xf32>
    %88 = vector.extract_strided_slice %86 {offsets = [0, 32], sizes = [2, 32], strides = [1, 1]} : vector<2x128xf32> to vector<2x32xf32>
    %89 = vector.extract_strided_slice %86 {offsets = [0, 96], sizes = [2, 32], strides = [1, 1]} : vector<2x128xf32> to vector<2x32xf32>
    %90 = vector.extract_strided_slice %79 {offsets = [0, 64], sizes = [2, 32], strides = [1, 1]} : vector<2x128xf32> to vector<2x32xf32>
    %91 = math.tanh %90 : vector<2x32xf32>
    %92 = arith.mulf %88, %73 : vector<2x32xf32>
    %93 = arith.mulf %87, %91 : vector<2x32xf32>
    %94 = arith.addf %92, %93 : vector<2x32xf32>
    %95 = math.tanh %94 : vector<2x32xf32>
    %96 = arith.mulf %89, %95 : vector<2x32xf32>
    %97 = vector.extract_strided_slice %9 {offsets = [4, 0, 0], sizes = [1, 2, 128], strides = [1, 1, 1]} : vector<8x2x128xf32> to vector<1x2x128xf32>
    %98 = vector.shape_cast %97 : vector<1x2x128xf32> to vector<2x128xf32>
    %cst_25 = arith.constant dense<0.000000e+00> : vector<2x128xf32>
    %99 = tpu.matmul %96, %10, %cst_25 {dimension_numbers = #tpu.dot_dimension_numbers<[1], [0], [0], [1], [0, 0, 1, 1], [], []>} : vector<2x32xf32>, vector<32x128xf32>, vector<2x128xf32> -> vector<2x128xf32>
    %100 = arith.addf %98, %99 : vector<2x128xf32>
    %cst_26 = arith.constant 5.000000e-01 : f32
    %101 = vector.broadcast %cst_26 : f32 to vector<2x128xf32>
    %102 = arith.mulf %101, %100 : vector<2x128xf32>
    %103 = math.tanh %102 : vector<2x128xf32>
    %cst_27 = arith.constant 5.000000e-01 : f32
    %104 = vector.broadcast %cst_27 : f32 to vector<2x128xf32>
    %105 = arith.mulf %104, %103 : vector<2x128xf32>
    %cst_28 = arith.constant 5.000000e-01 : f32
    %106 = vector.broadcast %cst_28 : f32 to vector<2x128xf32>
    %107 = arith.addf %105, %106 : vector<2x128xf32>
    %108 = vector.extract_strided_slice %107 {offsets = [0, 0], sizes = [2, 32], strides = [1, 1]} : vector<2x128xf32> to vector<2x32xf32>
    %109 = vector.extract_strided_slice %107 {offsets = [0, 32], sizes = [2, 32], strides = [1, 1]} : vector<2x128xf32> to vector<2x32xf32>
    %110 = vector.extract_strided_slice %107 {offsets = [0, 96], sizes = [2, 32], strides = [1, 1]} : vector<2x128xf32> to vector<2x32xf32>
    %111 = vector.extract_strided_slice %100 {offsets = [0, 64], sizes = [2, 32], strides = [1, 1]} : vector<2x128xf32> to vector<2x32xf32>
    %112 = math.tanh %111 : vector<2x32xf32>
    %113 = arith.mulf %109, %94 : vector<2x32xf32>
    %114 = arith.mulf %108, %112 : vector<2x32xf32>
    %115 = arith.addf %113, %114 : vector<2x32xf32>
    %116 = math.tanh %115 : vector<2x32xf32>
    %117 = arith.mulf %110, %116 : vector<2x32xf32>
    %118 = vector.extract_strided_slice %9 {offsets = [5, 0, 0], sizes = [1, 2, 128], strides = [1, 1, 1]} : vector<8x2x128xf32> to vector<1x2x128xf32>
    %119 = vector.shape_cast %118 : vector<1x2x128xf32> to vector<2x128xf32>
    %cst_29 = arith.constant dense<0.000000e+00> : vector<2x128xf32>
    %120 = tpu.matmul %117, %10, %cst_29 {dimension_numbers = #tpu.dot_dimension_numbers<[1], [0], [0], [1], [0, 0, 1, 1], [], []>} : vector<2x32xf32>, vector<32x128xf32>, vector<2x128xf32> -> vector<2x128xf32>
    %121 = arith.addf %119, %120 : vector<2x128xf32>
    %cst_30 = arith.constant 5.000000e-01 : f32
    %122 = vector.broadcast %cst_30 : f32 to vector<2x128xf32>
    %123 = arith.mulf %122, %121 : vector<2x128xf32>
    %124 = math.tanh %123 : vector<2x128xf32>
    %cst_31 = arith.constant 5.000000e-01 : f32
    %125 = vector.broadcast %cst_31 : f32 to vector<2x128xf32>
    %126 = arith.mulf %125, %124 : vector<2x128xf32>
    %cst_32 = arith.constant 5.000000e-01 : f32
    %127 = vector.broadcast %cst_32 : f32 to vector<2x128xf32>
    %128 = arith.addf %126, %127 : vector<2x128xf32>
    %129 = vector.extract_strided_slice %128 {offsets = [0, 0], sizes = [2, 32], strides = [1, 1]} : vector<2x128xf32> to vector<2x32xf32>
    %130 = vector.extract_strided_slice %128 {offsets = [0, 32], sizes = [2, 32], strides = [1, 1]} : vector<2x128xf32> to vector<2x32xf32>
    %131 = vector.extract_strided_slice %128 {offsets = [0, 96], sizes = [2, 32], strides = [1, 1]} : vector<2x128xf32> to vector<2x32xf32>
    %132 = vector.extract_strided_slice %121 {offsets = [0, 64], sizes = [2, 32], strides = [1, 1]} : vector<2x128xf32> to vector<2x32xf32>
    %133 = math.tanh %132 : vector<2x32xf32>
    %134 = arith.mulf %130, %115 : vector<2x32xf32>
    %135 = arith.mulf %129, %133 : vector<2x32xf32>
    %136 = arith.addf %134, %135 : vector<2x32xf32>
    %137 = math.tanh %136 : vector<2x32xf32>
    %138 = arith.mulf %131, %137 : vector<2x32xf32>
    %139 = vector.extract_strided_slice %9 {offsets = [6, 0, 0], sizes = [1, 2, 128], strides = [1, 1, 1]} : vector<8x2x128xf32> to vector<1x2x128xf32>
    %140 = vector.shape_cast %139 : vector<1x2x128xf32> to vector<2x128xf32>
    %cst_33 = arith.constant dense<0.000000e+00> : vector<2x128xf32>
    %141 = tpu.matmul %138, %10, %cst_33 {dimension_numbers = #tpu.dot_dimension_numbers<[1], [0], [0], [1], [0, 0, 1, 1], [], []>} : vector<2x32xf32>, vector<32x128xf32>, vector<2x128xf32> -> vector<2x128xf32>
    %142 = arith.addf %140, %141 : vector<2x128xf32>
    %cst_34 = arith.constant 5.000000e-01 : f32
    %143 = vector.broadcast %cst_34 : f32 to vector<2x128xf32>
    %144 = arith.mulf %143, %142 : vector<2x128xf32>
    %145 = math.tanh %144 : vector<2x128xf32>
    %cst_35 = arith.constant 5.000000e-01 : f32
    %146 = vector.broadcast %cst_35 : f32 to vector<2x128xf32>
    %147 = arith.mulf %146, %145 : vector<2x128xf32>
    %cst_36 = arith.constant 5.000000e-01 : f32
    %148 = vector.broadcast %cst_36 : f32 to vector<2x128xf32>
    %149 = arith.addf %147, %148 : vector<2x128xf32>
    %150 = vector.extract_strided_slice %149 {offsets = [0, 0], sizes = [2, 32], strides = [1, 1]} : vector<2x128xf32> to vector<2x32xf32>
    %151 = vector.extract_strided_slice %149 {offsets = [0, 32], sizes = [2, 32], strides = [1, 1]} : vector<2x128xf32> to vector<2x32xf32>
    %152 = vector.extract_strided_slice %149 {offsets = [0, 96], sizes = [2, 32], strides = [1, 1]} : vector<2x128xf32> to vector<2x32xf32>
    %153 = vector.extract_strided_slice %142 {offsets = [0, 64], sizes = [2, 32], strides = [1, 1]} : vector<2x128xf32> to vector<2x32xf32>
    %154 = math.tanh %153 : vector<2x32xf32>
    %155 = arith.mulf %151, %136 : vector<2x32xf32>
    %156 = arith.mulf %150, %154 : vector<2x32xf32>
    %157 = arith.addf %155, %156 : vector<2x32xf32>
    %158 = math.tanh %157 : vector<2x32xf32>
    %159 = arith.mulf %152, %158 : vector<2x32xf32>
    %160 = vector.extract_strided_slice %9 {offsets = [7, 0, 0], sizes = [1, 2, 128], strides = [1, 1, 1]} : vector<8x2x128xf32> to vector<1x2x128xf32>
    %161 = vector.shape_cast %160 : vector<1x2x128xf32> to vector<2x128xf32>
    %cst_37 = arith.constant dense<0.000000e+00> : vector<2x128xf32>
    %162 = tpu.matmul %159, %10, %cst_37 {dimension_numbers = #tpu.dot_dimension_numbers<[1], [0], [0], [1], [0, 0, 1, 1], [], []>} : vector<2x32xf32>, vector<32x128xf32>, vector<2x128xf32> -> vector<2x128xf32>
    %163 = arith.addf %161, %162 : vector<2x128xf32>
    %cst_38 = arith.constant 5.000000e-01 : f32
    %164 = vector.broadcast %cst_38 : f32 to vector<2x128xf32>
    %165 = arith.mulf %164, %163 : vector<2x128xf32>
    %166 = math.tanh %165 : vector<2x128xf32>
    %cst_39 = arith.constant 5.000000e-01 : f32
    %167 = vector.broadcast %cst_39 : f32 to vector<2x128xf32>
    %168 = arith.mulf %167, %166 : vector<2x128xf32>
    %cst_40 = arith.constant 5.000000e-01 : f32
    %169 = vector.broadcast %cst_40 : f32 to vector<2x128xf32>
    %170 = arith.addf %168, %169 : vector<2x128xf32>
    %171 = vector.extract_strided_slice %170 {offsets = [0, 0], sizes = [2, 32], strides = [1, 1]} : vector<2x128xf32> to vector<2x32xf32>
    %172 = vector.extract_strided_slice %170 {offsets = [0, 32], sizes = [2, 32], strides = [1, 1]} : vector<2x128xf32> to vector<2x32xf32>
    %173 = vector.extract_strided_slice %170 {offsets = [0, 96], sizes = [2, 32], strides = [1, 1]} : vector<2x128xf32> to vector<2x32xf32>
    %174 = vector.extract_strided_slice %163 {offsets = [0, 64], sizes = [2, 32], strides = [1, 1]} : vector<2x128xf32> to vector<2x32xf32>
    %175 = math.tanh %174 : vector<2x32xf32>
    %176 = arith.mulf %172, %157 : vector<2x32xf32>
    %177 = arith.mulf %171, %175 : vector<2x32xf32>
    %178 = arith.addf %176, %177 : vector<2x32xf32>
    %179 = math.tanh %178 : vector<2x32xf32>
    %180 = arith.mulf %173, %179 : vector<2x32xf32>
    %c0_41 = arith.constant 0 : index
    %c0_42 = arith.constant 0 : index
    %181 = vector.load %arg5[%c0_41, %c0_42] : memref<32x128xf32, #tpu.memory_space<vmem>>, vector<32x128xf32>
    %cst_43 = arith.constant dense<0.000000e+00> : vector<2x128xf32>
    %182 = tpu.matmul %180, %181, %cst_43 {dimension_numbers = #tpu.dot_dimension_numbers<[1], [0], [0], [1], [0, 0, 1, 1], [], []>} : vector<2x32xf32>, vector<32x128xf32>, vector<2x128xf32> -> vector<2x128xf32>
    %c0_44 = arith.constant 0 : index
    %c0_45 = arith.constant 0 : index
    %183 = vector.load %arg7[%c0_44, %c0_45] : memref<1x128xf32, #tpu.memory_space<vmem>>, vector<1x128xf32>
    %184 = vector.broadcast %183 : vector<1x128xf32> to vector<2x128xf32>
    %185 = arith.addf %182, %184 : vector<2x128xf32>
    %c0_46 = arith.constant 0 : index
    %c0_47 = arith.constant 0 : index
    %186 = vector.load %arg6[%c0_46, %c0_47] : memref<32x128xf32, #tpu.memory_space<vmem>>, vector<32x128xf32>
    %cst_48 = arith.constant 0.000000e+00 : f32
    %187 = vector.broadcast %cst_48 : f32 to vector<2x32xf32>
    %cst_49 = arith.constant 0.000000e+00 : f32
    %188 = vector.broadcast %cst_49 : f32 to vector<2x32xf32>
    %cst_50 = arith.constant dense<0.000000e+00> : vector<2x128xf32>
    %189 = tpu.matmul %187, %186, %cst_50 {dimension_numbers = #tpu.dot_dimension_numbers<[1], [0], [0], [1], [0, 0, 1, 1], [], []>} : vector<2x32xf32>, vector<32x128xf32>, vector<2x128xf32> -> vector<2x128xf32>
    %190 = arith.addf %185, %189 : vector<2x128xf32>
    %cst_51 = arith.constant 5.000000e-01 : f32
    %191 = vector.broadcast %cst_51 : f32 to vector<2x128xf32>
    %192 = arith.mulf %191, %190 : vector<2x128xf32>
    %193 = math.tanh %192 : vector<2x128xf32>
    %cst_52 = arith.constant 5.000000e-01 : f32
    %194 = vector.broadcast %cst_52 : f32 to vector<2x128xf32>
    %195 = arith.mulf %194, %193 : vector<2x128xf32>
    %cst_53 = arith.constant 5.000000e-01 : f32
    %196 = vector.broadcast %cst_53 : f32 to vector<2x128xf32>
    %197 = arith.addf %195, %196 : vector<2x128xf32>
    %198 = vector.extract_strided_slice %197 {offsets = [0, 0], sizes = [2, 32], strides = [1, 1]} : vector<2x128xf32> to vector<2x32xf32>
    %199 = vector.extract_strided_slice %197 {offsets = [0, 32], sizes = [2, 32], strides = [1, 1]} : vector<2x128xf32> to vector<2x32xf32>
    %200 = vector.extract_strided_slice %197 {offsets = [0, 96], sizes = [2, 32], strides = [1, 1]} : vector<2x128xf32> to vector<2x32xf32>
    %201 = vector.extract_strided_slice %190 {offsets = [0, 64], sizes = [2, 32], strides = [1, 1]} : vector<2x128xf32> to vector<2x32xf32>
    %202 = math.tanh %201 : vector<2x32xf32>
    %203 = arith.mulf %199, %188 : vector<2x32xf32>
    %204 = arith.mulf %198, %202 : vector<2x32xf32>
    %205 = arith.addf %203, %204 : vector<2x32xf32>
    %206 = math.tanh %205 : vector<2x32xf32>
    %207 = arith.mulf %200, %206 : vector<2x32xf32>
    %c0_54 = arith.constant 0 : index
    %c0_55 = arith.constant 0 : index
    %c0_56 = arith.constant 0 : index
    %208 = vector.load %arg11[%c0_54, %c0_55, %c0_56] : memref<8x2x32xf32, #tpu.memory_space<vmem>>, vector<1x2x32xf32>
    %209 = vector.shape_cast %208 : vector<1x2x32xf32> to vector<2x32xf32>
    %210 = vector.shape_cast %207 : vector<2x32xf32> to vector<1x2x32xf32>
    tpu.vector_store %arg11[%c0_54, %c0_55, %c0_56], %210 {strides = array<i32>} : memref<8x2x32xf32, #tpu.memory_space<vmem>>, vector<1x2x32xf32>,
    %cst_57 = arith.constant dense<0.000000e+00> : vector<2x128xf32>
    %211 = tpu.matmul %207, %186, %cst_57 {dimension_numbers = #tpu.dot_dimension_numbers<[1], [0], [0], [1], [0, 0, 1, 1], [], []>} : vector<2x32xf32>, vector<32x128xf32>, vector<2x128xf32> -> vector<2x128xf32>
    %212 = arith.addf %185, %211 : vector<2x128xf32>
    %cst_58 = arith.constant 5.000000e-01 : f32
    %213 = vector.broadcast %cst_58 : f32 to vector<2x128xf32>
    %214 = arith.mulf %213, %212 : vector<2x128xf32>
    %215 = math.tanh %214 : vector<2x128xf32>
    %cst_59 = arith.constant 5.000000e-01 : f32
    %216 = vector.broadcast %cst_59 : f32 to vector<2x128xf32>
    %217 = arith.mulf %216, %215 : vector<2x128xf32>
    %cst_60 = arith.constant 5.000000e-01 : f32
    %218 = vector.broadcast %cst_60 : f32 to vector<2x128xf32>
    %219 = arith.addf %217, %218 : vector<2x128xf32>
    %220 = vector.extract_strided_slice %219 {offsets = [0, 0], sizes = [2, 32], strides = [1, 1]} : vector<2x128xf32> to vector<2x32xf32>
    %221 = vector.extract_strided_slice %219 {offsets = [0, 32], sizes = [2, 32], strides = [1, 1]} : vector<2x128xf32> to vector<2x32xf32>
    %222 = vector.extract_strided_slice %219 {offsets = [0, 96], sizes = [2, 32], strides = [1, 1]} : vector<2x128xf32> to vector<2x32xf32>
    %223 = vector.extract_strided_slice %212 {offsets = [0, 64], sizes = [2, 32], strides = [1, 1]} : vector<2x128xf32> to vector<2x32xf32>
    %224 = math.tanh %223 : vector<2x32xf32>
    %225 = arith.mulf %221, %205 : vector<2x32xf32>
    %226 = arith.mulf %220, %224 : vector<2x32xf32>
    %227 = arith.addf %225, %226 : vector<2x32xf32>
    %228 = math.tanh %227 : vector<2x32xf32>
    %229 = arith.mulf %222, %228 : vector<2x32xf32>
    %c1 = arith.constant 1 : index
    %c0_61 = arith.constant 0 : index
    %c0_62 = arith.constant 0 : index
    %230 = vector.load %arg11[%c1, %c0_61, %c0_62] : memref<8x2x32xf32, #tpu.memory_space<vmem>>, vector<1x2x32xf32>
    %231 = vector.shape_cast %230 : vector<1x2x32xf32> to vector<2x32xf32>
    %232 = vector.shape_cast %229 : vector<2x32xf32> to vector<1x2x32xf32>
    tpu.vector_store %arg11[%c1, %c0_61, %c0_62], %232 {strides = array<i32>} : memref<8x2x32xf32, #tpu.memory_space<vmem>>, vector<1x2x32xf32>,
    %cst_63 = arith.constant dense<0.000000e+00> : vector<2x128xf32>
    %233 = tpu.matmul %229, %186, %cst_63 {dimension_numbers = #tpu.dot_dimension_numbers<[1], [0], [0], [1], [0, 0, 1, 1], [], []>} : vector<2x32xf32>, vector<32x128xf32>, vector<2x128xf32> -> vector<2x128xf32>
    %234 = arith.addf %185, %233 : vector<2x128xf32>
    %cst_64 = arith.constant 5.000000e-01 : f32
    %235 = vector.broadcast %cst_64 : f32 to vector<2x128xf32>
    %236 = arith.mulf %235, %234 : vector<2x128xf32>
    %237 = math.tanh %236 : vector<2x128xf32>
    %cst_65 = arith.constant 5.000000e-01 : f32
    %238 = vector.broadcast %cst_65 : f32 to vector<2x128xf32>
    %239 = arith.mulf %238, %237 : vector<2x128xf32>
    %cst_66 = arith.constant 5.000000e-01 : f32
    %240 = vector.broadcast %cst_66 : f32 to vector<2x128xf32>
    %241 = arith.addf %239, %240 : vector<2x128xf32>
    %242 = vector.extract_strided_slice %241 {offsets = [0, 0], sizes = [2, 32], strides = [1, 1]} : vector<2x128xf32> to vector<2x32xf32>
    %243 = vector.extract_strided_slice %241 {offsets = [0, 32], sizes = [2, 32], strides = [1, 1]} : vector<2x128xf32> to vector<2x32xf32>
    %244 = vector.extract_strided_slice %241 {offsets = [0, 96], sizes = [2, 32], strides = [1, 1]} : vector<2x128xf32> to vector<2x32xf32>
    %245 = vector.extract_strided_slice %234 {offsets = [0, 64], sizes = [2, 32], strides = [1, 1]} : vector<2x128xf32> to vector<2x32xf32>
    %246 = math.tanh %245 : vector<2x32xf32>
    %247 = arith.mulf %243, %227 : vector<2x32xf32>
    %248 = arith.mulf %242, %246 : vector<2x32xf32>
    %249 = arith.addf %247, %248 : vector<2x32xf32>
    %250 = math.tanh %249 : vector<2x32xf32>
    %251 = arith.mulf %244, %250 : vector<2x32xf32>
    %c2 = arith.constant 2 : index
    %c0_67 = arith.constant 0 : index
    %c0_68 = arith.constant 0 : index
    %252 = vector.load %arg11[%c2, %c0_67, %c0_68] : memref<8x2x32xf32, #tpu.memory_space<vmem>>, vector<1x2x32xf32>
    %253 = vector.shape_cast %252 : vector<1x2x32xf32> to vector<2x32xf32>
    %254 = vector.shape_cast %251 : vector<2x32xf32> to vector<1x2x32xf32>
    tpu.vector_store %arg11[%c2, %c0_67, %c0_68], %254 {strides = array<i32>} : memref<8x2x32xf32, #tpu.memory_space<vmem>>, vector<1x2x32xf32>,
    %cst_69 = arith.constant dense<0.000000e+00> : vector<2x128xf32>
    %255 = tpu.matmul %251, %186, %cst_69 {dimension_numbers = #tpu.dot_dimension_numbers<[1], [0], [0], [1], [0, 0, 1, 1], [], []>} : vector<2x32xf32>, vector<32x128xf32>, vector<2x128xf32> -> vector<2x128xf32>
    %256 = arith.addf %185, %255 : vector<2x128xf32>
    %cst_70 = arith.constant 5.000000e-01 : f32
    %257 = vector.broadcast %cst_70 : f32 to vector<2x128xf32>
    %258 = arith.mulf %257, %256 : vector<2x128xf32>
    %259 = math.tanh %258 : vector<2x128xf32>
    %cst_71 = arith.constant 5.000000e-01 : f32
    %260 = vector.broadcast %cst_71 : f32 to vector<2x128xf32>
    %261 = arith.mulf %260, %259 : vector<2x128xf32>
    %cst_72 = arith.constant 5.000000e-01 : f32
    %262 = vector.broadcast %cst_72 : f32 to vector<2x128xf32>
    %263 = arith.addf %261, %262 : vector<2x128xf32>
    %264 = vector.extract_strided_slice %263 {offsets = [0, 0], sizes = [2, 32], strides = [1, 1]} : vector<2x128xf32> to vector<2x32xf32>
    %265 = vector.extract_strided_slice %263 {offsets = [0, 32], sizes = [2, 32], strides = [1, 1]} : vector<2x128xf32> to vector<2x32xf32>
    %266 = vector.extract_strided_slice %263 {offsets = [0, 96], sizes = [2, 32], strides = [1, 1]} : vector<2x128xf32> to vector<2x32xf32>
    %267 = vector.extract_strided_slice %256 {offsets = [0, 64], sizes = [2, 32], strides = [1, 1]} : vector<2x128xf32> to vector<2x32xf32>
    %268 = math.tanh %267 : vector<2x32xf32>
    %269 = arith.mulf %265, %249 : vector<2x32xf32>
    %270 = arith.mulf %264, %268 : vector<2x32xf32>
    %271 = arith.addf %269, %270 : vector<2x32xf32>
    %272 = math.tanh %271 : vector<2x32xf32>
    %273 = arith.mulf %266, %272 : vector<2x32xf32>
    %c3 = arith.constant 3 : index
    %c0_73 = arith.constant 0 : index
    %c0_74 = arith.constant 0 : index
    %274 = vector.load %arg11[%c3, %c0_73, %c0_74] : memref<8x2x32xf32, #tpu.memory_space<vmem>>, vector<1x2x32xf32>
    %275 = vector.shape_cast %274 : vector<1x2x32xf32> to vector<2x32xf32>
    %276 = vector.shape_cast %273 : vector<2x32xf32> to vector<1x2x32xf32>
    tpu.vector_store %arg11[%c3, %c0_73, %c0_74], %276 {strides = array<i32>} : memref<8x2x32xf32, #tpu.memory_space<vmem>>, vector<1x2x32xf32>,
    %cst_75 = arith.constant dense<0.000000e+00> : vector<2x128xf32>
    %277 = tpu.matmul %273, %186, %cst_75 {dimension_numbers = #tpu.dot_dimension_numbers<[1], [0], [0], [1], [0, 0, 1, 1], [], []>} : vector<2x32xf32>, vector<32x128xf32>, vector<2x128xf32> -> vector<2x128xf32>
    %278 = arith.addf %185, %277 : vector<2x128xf32>
    %cst_76 = arith.constant 5.000000e-01 : f32
    %279 = vector.broadcast %cst_76 : f32 to vector<2x128xf32>
    %280 = arith.mulf %279, %278 : vector<2x128xf32>
    %281 = math.tanh %280 : vector<2x128xf32>
    %cst_77 = arith.constant 5.000000e-01 : f32
    %282 = vector.broadcast %cst_77 : f32 to vector<2x128xf32>
    %283 = arith.mulf %282, %281 : vector<2x128xf32>
    %cst_78 = arith.constant 5.000000e-01 : f32
    %284 = vector.broadcast %cst_78 : f32 to vector<2x128xf32>
    %285 = arith.addf %283, %284 : vector<2x128xf32>
    %286 = vector.extract_strided_slice %285 {offsets = [0, 0], sizes = [2, 32], strides = [1, 1]} : vector<2x128xf32> to vector<2x32xf32>
    %287 = vector.extract_strided_slice %285 {offsets = [0, 32], sizes = [2, 32], strides = [1, 1]} : vector<2x128xf32> to vector<2x32xf32>
    %288 = vector.extract_strided_slice %285 {offsets = [0, 96], sizes = [2, 32], strides = [1, 1]} : vector<2x128xf32> to vector<2x32xf32>
    %289 = vector.extract_strided_slice %278 {offsets = [0, 64], sizes = [2, 32], strides = [1, 1]} : vector<2x128xf32> to vector<2x32xf32>
    %290 = math.tanh %289 : vector<2x32xf32>
    %291 = arith.mulf %287, %271 : vector<2x32xf32>
    %292 = arith.mulf %286, %290 : vector<2x32xf32>
    %293 = arith.addf %291, %292 : vector<2x32xf32>
    %294 = math.tanh %293 : vector<2x32xf32>
    %295 = arith.mulf %288, %294 : vector<2x32xf32>
    %c4 = arith.constant 4 : index
    %c0_79 = arith.constant 0 : index
    %c0_80 = arith.constant 0 : index
    %296 = vector.load %arg11[%c4, %c0_79, %c0_80] : memref<8x2x32xf32, #tpu.memory_space<vmem>>, vector<1x2x32xf32>
    %297 = vector.shape_cast %296 : vector<1x2x32xf32> to vector<2x32xf32>
    %298 = vector.shape_cast %295 : vector<2x32xf32> to vector<1x2x32xf32>
    tpu.vector_store %arg11[%c4, %c0_79, %c0_80], %298 {strides = array<i32>} : memref<8x2x32xf32, #tpu.memory_space<vmem>>, vector<1x2x32xf32>,
    %cst_81 = arith.constant dense<0.000000e+00> : vector<2x128xf32>
    %299 = tpu.matmul %295, %186, %cst_81 {dimension_numbers = #tpu.dot_dimension_numbers<[1], [0], [0], [1], [0, 0, 1, 1], [], []>} : vector<2x32xf32>, vector<32x128xf32>, vector<2x128xf32> -> vector<2x128xf32>
    %300 = arith.addf %185, %299 : vector<2x128xf32>
    %cst_82 = arith.constant 5.000000e-01 : f32
    %301 = vector.broadcast %cst_82 : f32 to vector<2x128xf32>
    %302 = arith.mulf %301, %300 : vector<2x128xf32>
    %303 = math.tanh %302 : vector<2x128xf32>
    %cst_83 = arith.constant 5.000000e-01 : f32
    %304 = vector.broadcast %cst_83 : f32 to vector<2x128xf32>
    %305 = arith.mulf %304, %303 : vector<2x128xf32>
    %cst_84 = arith.constant 5.000000e-01 : f32
    %306 = vector.broadcast %cst_84 : f32 to vector<2x128xf32>
    %307 = arith.addf %305, %306 : vector<2x128xf32>
    %308 = vector.extract_strided_slice %307 {offsets = [0, 0], sizes = [2, 32], strides = [1, 1]} : vector<2x128xf32> to vector<2x32xf32>
    %309 = vector.extract_strided_slice %307 {offsets = [0, 32], sizes = [2, 32], strides = [1, 1]} : vector<2x128xf32> to vector<2x32xf32>
    %310 = vector.extract_strided_slice %307 {offsets = [0, 96], sizes = [2, 32], strides = [1, 1]} : vector<2x128xf32> to vector<2x32xf32>
    %311 = vector.extract_strided_slice %300 {offsets = [0, 64], sizes = [2, 32], strides = [1, 1]} : vector<2x128xf32> to vector<2x32xf32>
    %312 = math.tanh %311 : vector<2x32xf32>
    %313 = arith.mulf %309, %293 : vector<2x32xf32>
    %314 = arith.mulf %308, %312 : vector<2x32xf32>
    %315 = arith.addf %313, %314 : vector<2x32xf32>
    %316 = math.tanh %315 : vector<2x32xf32>
    %317 = arith.mulf %310, %316 : vector<2x32xf32>
    %c5 = arith.constant 5 : index
    %c0_85 = arith.constant 0 : index
    %c0_86 = arith.constant 0 : index
    %318 = vector.load %arg11[%c5, %c0_85, %c0_86] : memref<8x2x32xf32, #tpu.memory_space<vmem>>, vector<1x2x32xf32>
    %319 = vector.shape_cast %318 : vector<1x2x32xf32> to vector<2x32xf32>
    %320 = vector.shape_cast %317 : vector<2x32xf32> to vector<1x2x32xf32>
    tpu.vector_store %arg11[%c5, %c0_85, %c0_86], %320 {strides = array<i32>} : memref<8x2x32xf32, #tpu.memory_space<vmem>>, vector<1x2x32xf32>,
    %cst_87 = arith.constant dense<0.000000e+00> : vector<2x128xf32>
    %321 = tpu.matmul %317, %186, %cst_87 {dimension_numbers = #tpu.dot_dimension_numbers<[1], [0], [0], [1], [0, 0, 1, 1], [], []>} : vector<2x32xf32>, vector<32x128xf32>, vector<2x128xf32> -> vector<2x128xf32>
    %322 = arith.addf %185, %321 : vector<2x128xf32>
    %cst_88 = arith.constant 5.000000e-01 : f32
    %323 = vector.broadcast %cst_88 : f32 to vector<2x128xf32>
    %324 = arith.mulf %323, %322 : vector<2x128xf32>
    %325 = math.tanh %324 : vector<2x128xf32>
    %cst_89 = arith.constant 5.000000e-01 : f32
    %326 = vector.broadcast %cst_89 : f32 to vector<2x128xf32>
    %327 = arith.mulf %326, %325 : vector<2x128xf32>
    %cst_90 = arith.constant 5.000000e-01 : f32
    %328 = vector.broadcast %cst_90 : f32 to vector<2x128xf32>
    %329 = arith.addf %327, %328 : vector<2x128xf32>
    %330 = vector.extract_strided_slice %329 {offsets = [0, 0], sizes = [2, 32], strides = [1, 1]} : vector<2x128xf32> to vector<2x32xf32>
    %331 = vector.extract_strided_slice %329 {offsets = [0, 32], sizes = [2, 32], strides = [1, 1]} : vector<2x128xf32> to vector<2x32xf32>
    %332 = vector.extract_strided_slice %329 {offsets = [0, 96], sizes = [2, 32], strides = [1, 1]} : vector<2x128xf32> to vector<2x32xf32>
    %333 = vector.extract_strided_slice %322 {offsets = [0, 64], sizes = [2, 32], strides = [1, 1]} : vector<2x128xf32> to vector<2x32xf32>
    %334 = math.tanh %333 : vector<2x32xf32>
    %335 = arith.mulf %331, %315 : vector<2x32xf32>
    %336 = arith.mulf %330, %334 : vector<2x32xf32>
    %337 = arith.addf %335, %336 : vector<2x32xf32>
    %338 = math.tanh %337 : vector<2x32xf32>
    %339 = arith.mulf %332, %338 : vector<2x32xf32>
    %c6 = arith.constant 6 : index
    %c0_91 = arith.constant 0 : index
    %c0_92 = arith.constant 0 : index
    %340 = vector.load %arg11[%c6, %c0_91, %c0_92] : memref<8x2x32xf32, #tpu.memory_space<vmem>>, vector<1x2x32xf32>
    %341 = vector.shape_cast %340 : vector<1x2x32xf32> to vector<2x32xf32>
    %342 = vector.shape_cast %339 : vector<2x32xf32> to vector<1x2x32xf32>
    tpu.vector_store %arg11[%c6, %c0_91, %c0_92], %342 {strides = array<i32>} : memref<8x2x32xf32, #tpu.memory_space<vmem>>, vector<1x2x32xf32>,
    %cst_93 = arith.constant dense<0.000000e+00> : vector<2x128xf32>
    %343 = tpu.matmul %339, %186, %cst_93 {dimension_numbers = #tpu.dot_dimension_numbers<[1], [0], [0], [1], [0, 0, 1, 1], [], []>} : vector<2x32xf32>, vector<32x128xf32>, vector<2x128xf32> -> vector<2x128xf32>
    %344 = arith.addf %185, %343 : vector<2x128xf32>
    %cst_94 = arith.constant 5.000000e-01 : f32
    %345 = vector.broadcast %cst_94 : f32 to vector<2x128xf32>
    %346 = arith.mulf %345, %344 : vector<2x128xf32>
    %347 = math.tanh %346 : vector<2x128xf32>
    %cst_95 = arith.constant 5.000000e-01 : f32
    %348 = vector.broadcast %cst_95 : f32 to vector<2x128xf32>
    %349 = arith.mulf %348, %347 : vector<2x128xf32>
    %cst_96 = arith.constant 5.000000e-01 : f32
    %350 = vector.broadcast %cst_96 : f32 to vector<2x128xf32>
    %351 = arith.addf %349, %350 : vector<2x128xf32>
    %352 = vector.extract_strided_slice %351 {offsets = [0, 0], sizes = [2, 32], strides = [1, 1]} : vector<2x128xf32> to vector<2x32xf32>
    %353 = vector.extract_strided_slice %351 {offsets = [0, 32], sizes = [2, 32], strides = [1, 1]} : vector<2x128xf32> to vector<2x32xf32>
    %354 = vector.extract_strided_slice %351 {offsets = [0, 96], sizes = [2, 32], strides = [1, 1]} : vector<2x128xf32> to vector<2x32xf32>
    %355 = vector.extract_strided_slice %344 {offsets = [0, 64], sizes = [2, 32], strides = [1, 1]} : vector<2x128xf32> to vector<2x32xf32>
    %356 = math.tanh %355 : vector<2x32xf32>
    %357 = arith.mulf %353, %337 : vector<2x32xf32>
    %358 = arith.mulf %352, %356 : vector<2x32xf32>
    %359 = arith.addf %357, %358 : vector<2x32xf32>
    %360 = math.tanh %359 : vector<2x32xf32>
    %361 = arith.mulf %354, %360 : vector<2x32xf32>
    %c7 = arith.constant 7 : index
    %c0_97 = arith.constant 0 : index
    %c0_98 = arith.constant 0 : index
    %362 = vector.load %arg11[%c7, %c0_97, %c0_98] : memref<8x2x32xf32, #tpu.memory_space<vmem>>, vector<1x2x32xf32>
    %363 = vector.shape_cast %362 : vector<1x2x32xf32> to vector<2x32xf32>
    %364 = vector.shape_cast %361 : vector<2x32xf32> to vector<1x2x32xf32>
    tpu.vector_store %arg11[%c7, %c0_97, %c0_98], %364 {strides = array<i32>} : memref<8x2x32xf32, #tpu.memory_space<vmem>>, vector<1x2x32xf32>,
    %c0_99 = arith.constant 0 : index
    %c0_100 = arith.constant 0 : index
    %365 = vector.load %arg8[%c0_99, %c0_100] : memref<1x32xf32, #tpu.memory_space<vmem>>, vector<1x32xf32>
    %c0_101 = arith.constant 0 : index
    %c0_102 = arith.constant 0 : index
    %c0_103 = arith.constant 0 : index
    %366 = vector.load %arg11[%c0_101, %c0_102, %c0_103] : memref<8x2x32xf32, #tpu.memory_space<vmem>>, vector<8x2x32xf32>
    %367 = vector.shape_cast %365 : vector<1x32xf32> to vector<1x1x32xf32>
    %368 = vector.broadcast %367 : vector<1x1x32xf32> to vector<8x2x32xf32>
    %369 = arith.mulf %366, %368 : vector<8x2x32xf32>
    %cst_104 = arith.constant dense<0.000000e+00> : vector<8x2xf32>
    %370 = vector.multi_reduction <add>, %369, %cst_104 [2] : vector<8x2x32xf32> to vector<8x2xf32>
    %371 = vector.shape_cast %370 : vector<8x2xf32> to vector<8x2x1xf32>
    %c0_105 = arith.constant 0 : index
    %c0_106 = arith.constant 0 : index
    %372 = vector.load %arg9[%c0_105, %c0_106] : memref<1x1xf32, #tpu.memory_space<vmem>>, vector<1x1xf32>
    %373 = vector.shape_cast %372 : vector<1x1xf32> to vector<1x1x1xf32>
    %374 = vector.broadcast %373 : vector<1x1x1xf32> to vector<8x2x1xf32>
    %375 = arith.addf %371, %374 : vector<8x2x1xf32>
    %c0_107 = arith.constant 0 : index
    %c0_108 = arith.constant 0 : index
    %c0_109 = arith.constant 0 : index
    %376 = vector.load %arg10[%c0_107, %c0_108, %c0_109] : memref<8x2x1xf32, #tpu.memory_space<vmem>>, vector<8x2x1xf32>
    tpu.vector_store %arg10[%c0_107, %c0_108, %c0_109], %375 {strides = array<i32>} : memref<8x2x1xf32, #tpu.memory_space<vmem>>, vector<8x2x1xf32>,
    return
  }
  func.func @transform_0(%arg0: i32) -> (i32, i32, i32) {
    %c0_i32 = arith.constant 0 : i32
    %c0_i32_0 = arith.constant 0 : i32
    %c0_i32_1 = arith.constant 0 : i32
    return %c0_i32, %arg0, %c0_i32_0 : i32, i32, i32
  }
  func.func @transform_1(%arg0: i32) -> (i32, i32) {
    %c0_i32 = arith.constant 0 : i32
    %c0_i32_0 = arith.constant 0 : i32
    %c0_i32_1 = arith.constant 0 : i32
    return %c0_i32, %c0_i32_0 : i32, i32
  }
  func.func @transform_2(%arg0: i32) -> (i32, i32) {
    %c0_i32 = arith.constant 0 : i32
    %c0_i32_0 = arith.constant 0 : i32
    %c0_i32_1 = arith.constant 0 : i32
    return %c0_i32, %c0_i32_0 : i32, i32
  }
  func.func @transform_3(%arg0: i32) -> (i32, i32) {
    %c0_i32 = arith.constant 0 : i32
    %c0_i32_0 = arith.constant 0 : i32
    %c0_i32_1 = arith.constant 0 : i32
    return %c0_i32, %c0_i32_0 : i32, i32
  }
  func.func @transform_4(%arg0: i32) -> (i32, i32) {
    %c0_i32 = arith.constant 0 : i32
    %c0_i32_0 = arith.constant 0 : i32
    %c0_i32_1 = arith.constant 0 : i32
    return %c0_i32, %c0_i32_0 : i32, i32
  }
  func.func @transform_5(%arg0: i32) -> (i32, i32) {
    %c0_i32 = arith.constant 0 : i32
    %c0_i32_0 = arith.constant 0 : i32
    %c0_i32_1 = arith.constant 0 : i32
    return %c0_i32, %c0_i32_0 : i32, i32
  }
  func.func @transform_6(%arg0: i32) -> (i32, i32) {
    %c0_i32 = arith.constant 0 : i32
    %c0_i32_0 = arith.constant 0 : i32
    %c0_i32_1 = arith.constant 0 : i32
    return %c0_i32, %c0_i32_0 : i32, i32
  }
  func.func @transform_7(%arg0: i32) -> (i32, i32) {
    %c0_i32 = arith.constant 0 : i32
    %c0_i32_0 = arith.constant 0 : i32
    %c0_i32_1 = arith.constant 0 : i32
    return %c0_i32, %c0_i32_0 : i32, i32
  }
  func.func @transform_8(%arg0: i32) -> (i32, i32) {
    %c0_i32 = arith.constant 0 : i32
    %c0_i32_0 = arith.constant 0 : i32
    %c0_i32_1 = arith.constant 0 : i32
    return %c0_i32, %c0_i32_0 : i32, i32
  }
  func.func @transform_9(%arg0: i32) -> (i32, i32, i32) {
    %c0_i32 = arith.constant 0 : i32
    %c0_i32_0 = arith.constant 0 : i32
    %c0_i32_1 = arith.constant 0 : i32
    return %c0_i32, %arg0, %c0_i32_0 : i32, i32, i32
  }
}

</mosaic_0001>

<llo_original>
// kernel: predictor_forward.1
$region0: #{predictor_forward.1}
  #allocation0 [shape = 'u32[]', space=smem, size = 0x4, offset = 0x4, fixed_abs, tag = 'smem constant byte address 0x4 - core index']
  #allocation1 [shape = 'u32[144,128]{1,0:T(1,128)}', space=vmem, size = 0x12000, scoped, tag = 'internal scratch']
  #allocation2 [shape = 'f32[8,2,32]{2,1,0:T(2,128)}', space=vmem, size = 0x2000, scoped, tag = 'scratch operand']
  #allocation3 [shape = 'f32[1,1]{1,0:T(1,128)S(1)}', space=vmem, size = 0x200, scoped, tag = 'scoped memory for predictor_forward.1']
  %s0 = inlined_call_operand.vmem [shape: f32[8,2,1], index: 0, kind: input, shape index: {}]
  %s1 = inlined_call_operand.vmem [shape: f32[1,128], index: 1, kind: input, shape index: {}]
  %s2 = inlined_call_operand.vmem [shape: f32[32,128], index: 2, kind: input, shape index: {}]
  %s3 = inlined_call_operand.vmem [shape: f32[1,128], index: 3, kind: input, shape index: {}]
  %s4 = inlined_call_operand.hbm [shape: f32[32,128], index: 4, kind: input, shape index: {}]
  %s5 = inlined_call_operand.hbm [shape: f32[32,128], index: 5, kind: input, shape index: {}]
  %s6 = inlined_call_operand.vmem [shape: f32[1,128], index: 6, kind: input, shape index: {}]
  %s7 = inlined_call_operand.vmem [shape: f32[1,32], index: 7, kind: input, shape index: {}]
  %s8 = inlined_call_operand.<no memory space> [shape: f32[1,1], index: 8, kind: input, shape index: {}]
  %s9 = inlined_call_operand.vmem [shape: f32[8,2,1], index: 9, kind: output, shape index: {}]
  %s10 = sld [smem:[#allocation0]]
  $region54: #{predictor_forward.1} parent=0
    _
  %s12 = ssub.s32 1, %s10
  %s13 = scalar_select 0, %s12, %s10
  %v14 = vstv %s8
  %15 = vst [vmem:[#allocation3] sm:$0x1] %v14
  $region1: #{predictor_forward.1} parent=0
    #allocation4 [shape = 'u8[16384]{0}', space=vmem, size = 0x4000, scoped, tag = 'input window, operand 4, single buffered']
    #allocation5 [shape = 's32[1]{0}', space=sflag, size = 0x4, scoped, tag = 'scoped memory for predictor_forward.1']
    #allocation6 [shape = 'u8[16384]{0}', space=vmem, size = 0x4000, scoped, tag = 'input window, operand 5, single buffered']
    #allocation7 [shape = 's32[1]{0}', space=sflag, size = 0x4, scoped, tag = 'scoped memory for predictor_forward.1']
    %16 = vsyncpa [#allocation5], 0
    %17 = vsyncpa [#allocation7], 0
    // Predicated region
    $region2: #{predictor_forward.1} parent=1 // pred_check
      _
    $region3: #{predictor_forward.1} parent=1 // pred_check_branch
      %19 = sbr.rel (0) target = $region5
    $region4: #{predictor_forward.1} parent=1 // pred_region
      _
    $region5: #{predictor_forward.1} parent=1 // pred_fallthru
      _
    // Predicated region
    $region6: #{predictor_forward.1} parent=1 // pred_check
      _
    $region7: #{predictor_forward.1} parent=1 // pred_check_branch
      %21 = sbr.rel (0) target = $region9
    $region8: #{predictor_forward.1} parent=1 // pred_region
      _
    $region9: #{predictor_forward.1} parent=1 // pred_fallthru
      _
    // Predicated region
    $region10: #{predictor_forward.1} parent=1 // pred_check
      _
    $region11: #{predictor_forward.1} parent=1 // pred_check_branch
      %23 = sbr.rel (0) target = $region13
    $region12: #{predictor_forward.1} parent=1 // pred_region
      _
    $region13: #{predictor_forward.1} parent=1 // pred_fallthru
      _
    // Predicated region
    $region14: #{predictor_forward.1} parent=1 // pred_check
      _
    $region15: #{predictor_forward.1} parent=1 // pred_check_branch
      %25 = sbr.rel (0) target = $region17
    $region16: #{predictor_forward.1} parent=1 // pred_region
      _
    $region17: #{predictor_forward.1} parent=1 // pred_fallthru
      _
    // Predicated region
    $region18: #{predictor_forward.1} parent=1 // pred_check
      _
    $region19: #{predictor_forward.1} parent=1 // pred_check_branch
      %27 = sbr.rel (0) target = $region21
    $region20: #{predictor_forward.1} parent=1 // pred_region
      %s29 = ssub.s32 512, 512
      %30 = vsyncadd [#allocation5], %s29
      %s31 = sshll.u32 [#allocation4], 4
      %s32 = int_to_ptr.vmem [resolvable:$true] %s31
      %37 = dma.hbm_to_vmem [thread:$0]  %s4, 512, %s32, [#allocation5], 128, 128, 8
    $region21: #{predictor_forward.1} parent=1 // pred_fallthru
      _
    // Predicated region
    $region22: #{predictor_forward.1} parent=1 // pred_check
      _
    $region23: #{predictor_forward.1} parent=1 // pred_check_branch
      %39 = sbr.rel (0) target = $region25
    $region24: #{predictor_forward.1} parent=1 // pred_region
      %s41 = ssub.s32 512, 512
      %42 = vsyncadd [#allocation7], %s41
      %s43 = sshll.u32 [#allocation6], 4
      %s44 = int_to_ptr.vmem [resolvable:$true] %s43
      %49 = dma.hbm_to_vmem [thread:$0]  %s5, 512, %s44, [#allocation7], 128, 128, 8
    $region25: #{predictor_forward.1} parent=1 // pred_fallthru
      _
    // Predicated region
    $region26: #{predictor_forward.1} parent=1 // pred_check
      _
    $region27: #{predictor_forward.1} parent=1 // pred_check_branch
      %51 = sbr.rel (0) target = $region29
    $region28: #{predictor_forward.1} parent=1 // pred_region
      _
    $region29: #{predictor_forward.1} parent=1 // pred_fallthru
      _
    // Predicated region
    $region30: #{predictor_forward.1} parent=1 // pred_check
      _
    $region31: #{predictor_forward.1} parent=1 // pred_check_branch
      %53 = sbr.rel (0) target = $region33
    $region32: #{predictor_forward.1} parent=1 // pred_region
      _
    $region33: #{predictor_forward.1} parent=1 // pred_fallthru
      _
    // Predicated region
    $region34: #{predictor_forward.1} parent=1 // pred_check
      _
    $region35: #{predictor_forward.1} parent=1 // pred_check_branch
      %55 = sbr.rel (0) target = $region37
    $region36: #{predictor_forward.1} parent=1 // pred_region
      _
    $region37: #{predictor_forward.1} parent=1 // pred_fallthru
      _
    // Predicated region
    $region38: #{predictor_forward.1} parent=1 // pred_check
      _
    $region39: #{predictor_forward.1} parent=1 // pred_check_branch
      %57 = sbr.rel (0) target = $region41
    $region40: #{predictor_forward.1} parent=1 // pred_region
      %58 = dma.done [#allocation5], 512
    $region41: #{predictor_forward.1} parent=1 // pred_fallthru
      _
    // Predicated region
    $region42: #{predictor_forward.1} parent=1 // pred_check
      _
    $region43: #{predictor_forward.1} parent=1 // pred_check_branch
      %60 = sbr.rel (0) target = $region45
    $region44: #{predictor_forward.1} parent=1 // pred_region
      %61 = dma.done [#allocation7], 512
    $region45: #{predictor_forward.1} parent=1 // pred_fallthru
      _
    %v62 = vld [vmem:[%s0] sm:$0x3]
    %v63 = vld [vmem:[%s0 + $0x2] sm:$0x3]
    %v64 = vld [vmem:[%s0 + $0x4] sm:$0x3]
    %v65 = vld [vmem:[%s0 + $0x6] sm:$0x3]
    %v66 = vld [vmem:[%s0 + $0x8] sm:$0x3]
    %v67 = vld [vmem:[%s0 + $0xa] sm:$0x3]
    %v68 = vld [vmem:[%s0 + $0xc] sm:$0x3]
    %v69 = vld [vmem:[%s0 + $0xe] sm:$0x3]
    %v70 = vld [vmem:[%s1] sm:$0x1]
    %72 = vset.pattern.permute.xlu0 0
    %73 = vperm.xlu0 %72, %v62
    %v74 = vpop.permute.xlu0 %73
    %77 = vset.pattern.permute.xlu0 0
    %78 = vperm.xlu0 %77, %v63
    %v79 = vpop.permute.xlu0 %78
    %82 = vset.pattern.permute.xlu0 0
    %83 = vperm.xlu0 %82, %v64
    %v84 = vpop.permute.xlu0 %83
    %87 = vset.pattern.permute.xlu0 0
    %88 = vperm.xlu0 %87, %v65
    %v89 = vpop.permute.xlu0 %88
    %92 = vset.pattern.permute.xlu0 0
    %93 = vperm.xlu0 %92, %v66
    %v94 = vpop.permute.xlu0 %93
    %97 = vset.pattern.permute.xlu0 0
    %98 = vperm.xlu0 %97, %v67
    %v99 = vpop.permute.xlu0 %98
    %102 = vset.pattern.permute.xlu0 0
    %103 = vperm.xlu0 %102, %v68
    %v104 = vpop.permute.xlu0 %103
    %107 = vset.pattern.permute.xlu0 0
    %108 = vperm.xlu0 %107, %v69
    %v109 = vpop.permute.xlu0 %108
    %v112 = vlaneseq
    %v113 = vshrl.u32 %v112, 7
    %v114 = vsub.s32 0, %v113
    %v115 = vrot.slane %v70, %v114
    %v117 = vmul.f32 %v74, %v115
    %v118 = vmul.f32 %v79, %v115
    %v119 = vmul.f32 %v84, %v115
    %v120 = vmul.f32 %v89, %v115
    %v121 = vmul.f32 %v94, %v115
    %v122 = vmul.f32 %v99, %v115
    %v123 = vmul.f32 %v104, %v115
    %v124 = vmul.f32 %v109, %v115
    %v125 = vld [vmem:[%s3] sm:$0x1]
    %v127 = vlaneseq
    %v128 = vshrl.u32 %v127, 7
    %v129 = vsub.s32 0, %v128
    %v130 = vrot.slane %v125, %v129
    %v132 = vadd.f32 %v117, %v130
    %v133 = vadd.f32 %v118, %v130
    %v134 = vadd.f32 %v119, %v130
    %v135 = vadd.f32 %v120, %v130
    %v136 = vadd.f32 %v121, %v130
    %v137 = vadd.f32 %v122, %v130
    %v138 = vadd.f32 %v123, %v130
    %v139 = vadd.f32 %v124, %v130
    %v140 = vld [vmem:[%s2] sm:$0xff]
    %v141 = vld [vmem:[%s2 + $0x8] sm:$0xff]
    %v142 = vld [vmem:[%s2 + $0x10] sm:$0xff]
    %v143 = vld [vmem:[%s2 + $0x18] sm:$0xff]
    %vm144 = vcmask 261120
    %v146 = vsel %vm144, 0.0, 0
    %148 = vmatprep.subr.mxu0 0.0
    %149 = vmatpush1.msra.mxu0 %v140
    %150 = vmatprep.subr.mxu0 0.0
    %151 = vmatpush1.msra.mxu0 %v141
    %152 = vmatprep.subr.mxu0 0.0
    %153 = vmatpush1.msra.mxu0 %v142
    %154 = vmatprep.subr.mxu0 0.0
    %155 = vmatpush1.msra.mxu0 %v143
    %156 = vmatprep.subr.mxu0 0.0
    %157 = vmatpush1.msra.mxu0 0.0
    %158 = vmatprep.subr.mxu0 0.0
    %159 = vmatpush1.msra.mxu0 0.0
    %160 = vmatprep.subr.mxu0 0.0
    %161 = vmatpush1.msra.mxu0 0.0
    %162 = vmatprep.subr.mxu0 0.0
    %163 = vmatpush1.msra.mxu0 0.0
    %164 = vmatprep.subr.mxu0 0.0
    %165 = vmatpush1.msra.mxu0 0.0
    %166 = vmatprep.subr.mxu0 0.0
    %167 = vmatpush1.msra.mxu0 0.0
    %168 = vmatprep.subr.mxu0 0.0
    %169 = vmatpush1.msra.mxu0 0.0
    %170 = vmatprep.subr.mxu0 0.0
    %171 = vmatpush1.msra.mxu0 0.0
    %172 = vmatprep.subr.mxu0 0.0
    %173 = vmatpush1.msra.mxu0 0.0
    %174 = vmatprep.subr.mxu0 0.0
    %175 = vmatpush1.msra.mxu0 0.0
    %176 = vmatprep.subr.mxu0 0.0
    %177 = vmatpush1.msra.mxu0 0.0
    %178 = vmatprep.subr.mxu0 0.0
    %179 = vmatpush1.msra.mxu0 0.0
    %180 = vmatprep.subr.mxu0 0.0
    %181 = vmatpush1.msra.mxu0 0.0
    %182 = vmatprep.subr.mxu0 0.0
    %183 = vmatpush1.msra.mxu0 0.0
    %184 = vmatprep.subr.mxu0 0.0
    %185 = vmatpush1.msra.mxu0 0.0
    %186 = vmatprep.subr.mxu0 0.0
    %187 = vmatpush1.msra.mxu0 0.0
    %188 = vmatprep.subr.mxu0 0.0
    %189 = vmatpush1.msra.mxu0 0.0
    %190 = vmatprep.subr.mxu0 0.0
    %191 = vmatpush1.msra.mxu0 0.0
    %192 = vmatprep.subr.mxu0 0.0
    %193 = vmatpush1.msra.mxu0 0.0
    %194 = vmatprep.subr.mxu0 0.0
    %195 = vmatpush1.msra.mxu0 0.0
    %196 = vmatprep.subr.mxu0 0.0
    %197 = vmatpush1.msra.mxu0 0.0
    %198 = vmatprep.subr.mxu0 0.0
    %199 = vmatpush1.msra.mxu0 0.0
    %200 = vmatprep.subr.mxu0 0.0
    %201 = vmatpush1.msra.mxu0 0.0
    %202 = vmatprep.subr.mxu0 0.0
    %203 = vmatpush1.msra.mxu0 0.0
    %204 = vmatprep.subr.mxu0 0.0
    %205 = vmatpush1.msra.mxu0 0.0
    %206 = vmatprep.subr.mxu0 0.0
    %207 = vmatpush1.msra.mxu0 0.0
    %208 = vmatprep.subr.mxu0 0.0
    %209 = vmatpush1.msra.mxu0 0.0
    %210 = vmatprep.subr.mxu0 0.0
    %211 = vmatpush1.msra.mxu0 0.0
    %212 = vmatprep.mubr.f32.mxu0 0.0
    %213 = vmatmul.mubr.f32.gmra.mrb[0].mxu0 %v146
    %v214 = vpop.f32.mrb[0].mxu0
    %v215 = vadd.f32 0.0, %v214
    %v216 = vpop.f32.mrb[0].mxu0
    %217 = vdwg.mxu0
    %v218 = vadd.f32 %v132, %v215
    %v219 = vmul.f32 %v218, 0.5
    %v220 = vtanh.pop %v219
    %v221 = vmul.f32 %v220, 0.5
    %v222 = vadd.f32 %v221, 0.5
    %v223 = vtanh.pop %v218
    %v224 = vmul.f32 %v222, 0.0
    %226 = vrot.lane.b32.xlu0 %v223, 64
    %v227 = vpop.permute.xlu0 %226
    %v229 = vmul.f32 %v222, %v227
    %231 = vrot.lane.b32.xlu0 %v229, 32
    %v232 = vpop.permute.xlu0 %231
    %v234 = vadd.f32 %v224, %v232
    %v235 = vtanh.pop %v234
    %237 = vrot.lane.b32.xlu0 %v235, 64
    %v238 = vpop.permute.xlu0 %237
    %v240 = vmul.f32 %v222, %v238
    %242 = vrot.lane.b32.xlu0 %v240, 32
    %v243 = vpop.permute.xlu0 %242
    %v244 = vsel %vm144, %v243, 0
    %246 = vmatprep.subr.mxu0 0.0
    %247 = vmatpush1.msra.mxu0 %v140
    %248 = vmatprep.subr.mxu0 0.0
    %249 = vmatpush1.msra.mxu0 %v141
    %250 = vmatprep.subr.mxu0 0.0
    %251 = vmatpush1.msra.mxu0 %v142
    %252 = vmatprep.subr.mxu0 0.0
    %253 = vmatpush1.msra.mxu0 %v143
    %254 = vmatprep.subr.mxu0 0.0
    %255 = vmatpush1.msra.mxu0 0.0
    %256 = vmatprep.subr.mxu0 0.0
    %257 = vmatpush1.msra.mxu0 0.0
    %258 = vmatprep.subr.mxu0 0.0
    %259 = vmatpush1.msra.mxu0 0.0
    %260 = vmatprep.subr.mxu0 0.0
    %261 = vmatpush1.msra.mxu0 0.0
    %262 = vmatprep.subr.mxu0 0.0
    %263 = vmatpush1.msra.mxu0 0.0
    %264 = vmatprep.subr.mxu0 0.0
    %265 = vmatpush1.msra.mxu0 0.0
    %266 = vmatprep.subr.mxu0 0.0
    %267 = vmatpush1.msra.mxu0 0.0
    %268 = vmatprep.subr.mxu0 0.0
    %269 = vmatpush1.msra.mxu0 0.0
    %270 = vmatprep.subr.mxu0 0.0
    %271 = vmatpush1.msra.mxu0 0.0
    %272 = vmatprep.subr.mxu0 0.0
    %273 = vmatpush1.msra.mxu0 0.0
    %274 = vmatprep.subr.mxu0 0.0
    %275 = vmatpush1.msra.mxu0 0.0
    %276 = vmatprep.subr.mxu0 0.0
    %277 = vmatpush1.msra.mxu0 0.0
    %278 = vmatprep.subr.mxu0 0.0
    %279 = vmatpush1.msra.mxu0 0.0
    %280 = vmatprep.subr.mxu0 0.0
    %281 = vmatpush1.msra.mxu0 0.0
    %282 = vmatprep.subr.mxu0 0.0
    %283 = vmatpush1.msra.mxu0 0.0
    %284 = vmatprep.subr.mxu0 0.0
    %285 = vmatpush1.msra.mxu0 0.0
    %286 = vmatprep.subr.mxu0 0.0
    %287 = vmatpush1.msra.mxu0 0.0
    %288 = vmatprep.subr.mxu0 0.0
    %289 = vmatpush1.msra.mxu0 0.0
    %290 = vmatprep.subr.mxu0 0.0
    %291 = vmatpush1.msra.mxu0 0.0
    %292 = vmatprep.subr.mxu0 0.0
    %293 = vmatpush1.msra.mxu0 0.0
    %294 = vmatprep.subr.mxu0 0.0
    %295 = vmatpush1.msra.mxu0 0.0
    %296 = vmatprep.subr.mxu0 0.0
    %297 = vmatpush1.msra.mxu0 0.0
    %298 = vmatprep.subr.mxu0 0.0
    %299 = vmatpush1.msra.mxu0 0.0
    %300 = vmatprep.subr.mxu0 0.0
    %301 = vmatpush1.msra.mxu0 0.0
    %302 = vmatprep.subr.mxu0 0.0
    %303 = vmatpush1.msra.mxu0 0.0
    %304 = vmatprep.subr.mxu0 0.0
    %305 = vmatpush1.msra.mxu0 0.0
    %306 = vmatprep.subr.mxu0 0.0
    %307 = vmatpush1.msra.mxu0 0.0
    %308 = vmatprep.subr.mxu0 0.0
    %309 = vmatpush1.msra.mxu0 0.0
    %310 = vmatprep.mubr.f32.mxu0 0.0
    %311 = vmatmul.mubr.f32.gmra.mrb[0].mxu0 %v244
    %v312 = vpop.f32.mrb[0].mxu0
    %v313 = vadd.f32 0.0, %v312
    %v314 = vpop.f32.mrb[0].mxu0
    %315 = vdwg.mxu0
    %v316 = vadd.f32 %v133, %v313
    %v317 = vmul.f32 %v316, 0.5
    %v318 = vtanh.pop %v317
    %v319 = vmul.f32 %v318, 0.5
    %v320 = vadd.f32 %v319, 0.5
    %v321 = vtanh.pop %v316
    %v322 = vmul.f32 %v320, %v234
    %324 = vrot.lane.b32.xlu0 %v321, 64
    %v325 = vpop.permute.xlu0 %324
    %v327 = vmul.f32 %v320, %v325
    %329 = vrot.lane.b32.xlu0 %v327, 32
    %v330 = vpop.permute.xlu0 %329
    %v332 = vadd.f32 %v322, %v330
    %v333 = vtanh.pop %v332
    %335 = vrot.lane.b32.xlu0 %v333, 64
    %v336 = vpop.permute.xlu0 %335
    %v338 = vmul.f32 %v320, %v336
    %340 = vrot.lane.b32.xlu0 %v338, 32
    %v341 = vpop.permute.xlu0 %340
    %v342 = vsel %vm144, %v341, 0
    %344 = vmatprep.subr.mxu0 0.0
    %345 = vmatpush1.msra.mxu0 %v140
    %346 = vmatprep.subr.mxu0 0.0
    %347 = vmatpush1.msra.mxu0 %v141
    %348 = vmatprep.subr.mxu0 0.0
    %349 = vmatpush1.msra.mxu0 %v142
    %350 = vmatprep.subr.mxu0 0.0
    %351 = vmatpush1.msra.mxu0 %v143
    %352 = vmatprep.subr.mxu0 0.0
    %353 = vmatpush1.msra.mxu0 0.0
    %354 = vmatprep.subr.mxu0 0.0
    %355 = vmatpush1.msra.mxu0 0.0
    %356 = vmatprep.subr.mxu0 0.0
    %357 = vmatpush1.msra.mxu0 0.0
    %358 = vmatprep.subr.mxu0 0.0
    %359 = vmatpush1.msra.mxu0 0.0
    %360 = vmatprep.subr.mxu0 0.0
    %361 = vmatpush1.msra.mxu0 0.0
    %362 = vmatprep.subr.mxu0 0.0
    %363 = vmatpush1.msra.mxu0 0.0
    %364 = vmatprep.subr.mxu0 0.0
    %365 = vmatpush1.msra.mxu0 0.0
    %366 = vmatprep.subr.mxu0 0.0
    %367 = vmatpush1.msra.mxu0 0.0
    %368 = vmatprep.subr.mxu0 0.0
    %369 = vmatpush1.msra.mxu0 0.0
    %370 = vmatprep.subr.mxu0 0.0
    %371 = vmatpush1.msra.mxu0 0.0
    %372 = vmatprep.subr.mxu0 0.0
    %373 = vmatpush1.msra.mxu0 0.0
    %374 = vmatprep.subr.mxu0 0.0
    %375 = vmatpush1.msra.mxu0 0.0
    %376 = vmatprep.subr.mxu0 0.0
    %377 = vmatpush1.msra.mxu0 0.0
    %378 = vmatprep.subr.mxu0 0.0
    %379 = vmatpush1.msra.mxu0 0.0
    %380 = vmatprep.subr.mxu0 0.0
    %381 = vmatpush1.msra.mxu0 0.0
    %382 = vmatprep.subr.mxu0 0.0
    %383 = vmatpush1.msra.mxu0 0.0
    %384 = vmatprep.subr.mxu0 0.0
    %385 = vmatpush1.msra.mxu0 0.0
    %386 = vmatprep.subr.mxu0 0.0
    %387 = vmatpush1.msra.mxu0 0.0
    %388 = vmatprep.subr.mxu0 0.0
    %389 = vmatpush1.msra.mxu0 0.0
    %390 = vmatprep.subr.mxu0 0.0
    %391 = vmatpush1.msra.mxu0 0.0
    %392 = vmatprep.subr.mxu0 0.0
    %393 = vmatpush1.msra.mxu0 0.0
    %394 = vmatprep.subr.mxu0 0.0
    %395 = vmatpush1.msra.mxu0 0.0
    %396 = vmatprep.subr.mxu0 0.0
    %397 = vmatpush1.msra.mxu0 0.0
    %398 = vmatprep.subr.mxu0 0.0
    %399 = vmatpush1.msra.mxu0 0.0
    %400 = vmatprep.subr.mxu0 0.0
    %401 = vmatpush1.msra.mxu0 0.0
    %402 = vmatprep.subr.mxu0 0.0
    %403 = vmatpush1.msra.mxu0 0.0
    %404 = vmatprep.subr.mxu0 0.0
    %405 = vmatpush1.msra.mxu0 0.0
    %406 = vmatprep.subr.mxu0 0.0
    %407 = vmatpush1.msra.mxu0 0.0
    %408 = vmatprep.mubr.f32.mxu0 0.0
    %409 = vmatmul.mubr.f32.gmra.mrb[0].mxu0 %v342
    %v410 = vpop.f32.mrb[0].mxu0
    %v411 = vadd.f32 0.0, %v410
    %v412 = vpop.f32.mrb[0].mxu0
    %413 = vdwg.mxu0
    %v414 = vadd.f32 %v134, %v411
    %v415 = vmul.f32 %v414, 0.5
    %v416 = vtanh.pop %v415
    %v417 = vmul.f32 %v416, 0.5
    %v418 = vadd.f32 %v417, 0.5
    %v419 = vtanh.pop %v414
    %v420 = vmul.f32 %v418, %v332
    %422 = vrot.lane.b32.xlu0 %v419, 64
    %v423 = vpop.permute.xlu0 %422
    %v425 = vmul.f32 %v418, %v423
    %427 = vrot.lane.b32.xlu0 %v425, 32
    %v428 = vpop.permute.xlu0 %427
    %v430 = vadd.f32 %v420, %v428
    %v431 = vtanh.pop %v430
    %433 = vrot.lane.b32.xlu0 %v431, 64
    %v434 = vpop.permute.xlu0 %433
    %v436 = vmul.f32 %v418, %v434
    %438 = vrot.lane.b32.xlu0 %v436, 32
    %v439 = vpop.permute.xlu0 %438
    %v440 = vsel %vm144, %v439, 0
    %442 = vmatprep.subr.mxu0 0.0
    %443 = vmatpush1.msra.mxu0 %v140
    %444 = vmatprep.subr.mxu0 0.0
    %445 = vmatpush1.msra.mxu0 %v141
    %446 = vmatprep.subr.mxu0 0.0
    %447 = vmatpush1.msra.mxu0 %v142
    %448 = vmatprep.subr.mxu0 0.0
    %449 = vmatpush1.msra.mxu0 %v143
    %450 = vmatprep.subr.mxu0 0.0
    %451 = vmatpush1.msra.mxu0 0.0
    %452 = vmatprep.subr.mxu0 0.0
    %453 = vmatpush1.msra.mxu0 0.0
    %454 = vmatprep.subr.mxu0 0.0
    %455 = vmatpush1.msra.mxu0 0.0
    %456 = vmatprep.subr.mxu0 0.0
    %457 = vmatpush1.msra.mxu0 0.0
    %458 = vmatprep.subr.mxu0 0.0
    %459 = vmatpush1.msra.mxu0 0.0
    %460 = vmatprep.subr.mxu0 0.0
    %461 = vmatpush1.msra.mxu0 0.0
    %462 = vmatprep.subr.mxu0 0.0
    %463 = vmatpush1.msra.mxu0 0.0
    %464 = vmatprep.subr.mxu0 0.0
    %465 = vmatpush1.msra.mxu0 0.0
    %466 = vmatprep.subr.mxu0 0.0
    %467 = vmatpush1.msra.mxu0 0.0
    %468 = vmatprep.subr.mxu0 0.0
    %469 = vmatpush1.msra.mxu0 0.0
    %470 = vmatprep.subr.mxu0 0.0
    %471 = vmatpush1.msra.mxu0 0.0
    %472 = vmatprep.subr.mxu0 0.0
    %473 = vmatpush1.msra.mxu0 0.0
    %474 = vmatprep.subr.mxu0 0.0
    %475 = vmatpush1.msra.mxu0 0.0
    %476 = vmatprep.subr.mxu0 0.0
    %477 = vmatpush1.msra.mxu0 0.0
    %478 = vmatprep.subr.mxu0 0.0
    %479 = vmatpush1.msra.mxu0 0.0
    %480 = vmatprep.subr.mxu0 0.0
    %481 = vmatpush1.msra.mxu0 0.0
    %482 = vmatprep.subr.mxu0 0.0
    %483 = vmatpush1.msra.mxu0 0.0
    %484 = vmatprep.subr.mxu0 0.0
    %485 = vmatpush1.msra.mxu0 0.0
    %486 = vmatprep.subr.mxu0 0.0
    %487 = vmatpush1.msra.mxu0 0.0
    %488 = vmatprep.subr.mxu0 0.0
    %489 = vmatpush1.msra.mxu0 0.0
    %490 = vmatprep.subr.mxu0 0.0
    %491 = vmatpush1.msra.mxu0 0.0
    %492 = vmatprep.subr.mxu0 0.0
    %493 = vmatpush1.msra.mxu0 0.0
    %494 = vmatprep.subr.mxu0 0.0
    %495 = vmatpush1.msra.mxu0 0.0
    %496 = vmatprep.subr.mxu0 0.0
    %497 = vmatpush1.msra.mxu0 0.0
    %498 = vmatprep.subr.mxu0 0.0
    %499 = vmatpush1.msra.mxu0 0.0
    %500 = vmatprep.subr.mxu0 0.0
    %501 = vmatpush1.msra.mxu0 0.0
    %502 = vmatprep.subr.mxu0 0.0
    %503 = vmatpush1.msra.mxu0 0.0
    %504 = vmatprep.subr.mxu0 0.0
    %505 = vmatpush1.msra.mxu0 0.0
    %506 = vmatprep.mubr.f32.mxu0 0.0
    %507 = vmatmul.mubr.f32.gmra.mrb[0].mxu0 %v440
    %v508 = vpop.f32.mrb[0].mxu0
    %v509 = vadd.f32 0.0, %v508
    %v510 = vpop.f32.mrb[0].mxu0
    %511 = vdwg.mxu0
    %v512 = vadd.f32 %v135, %v509
    %v513 = vmul.f32 %v512, 0.5
    %v514 = vtanh.pop %v513
    %v515 = vmul.f32 %v514, 0.5
    %v516 = vadd.f32 %v515, 0.5
    %v517 = vtanh.pop %v512
    %v518 = vmul.f32 %v516, %v430
    %520 = vrot.lane.b32.xlu0 %v517, 64
    %v521 = vpop.permute.xlu0 %520
    %v523 = vmul.f32 %v516, %v521
    %525 = vrot.lane.b32.xlu0 %v523, 32
    %v526 = vpop.permute.xlu0 %525
    %v528 = vadd.f32 %v518, %v526
    %v529 = vtanh.pop %v528
    %531 = vrot.lane.b32.xlu0 %v529, 64
    %v532 = vpop.permute.xlu0 %531
    %v534 = vmul.f32 %v516, %v532
    %536 = vrot.lane.b32.xlu0 %v534, 32
    %v537 = vpop.permute.xlu0 %536
    %v538 = vsel %vm144, %v537, 0
    %540 = vmatprep.subr.mxu0 0.0
    %541 = vmatpush1.msra.mxu0 %v140
    %542 = vmatprep.subr.mxu0 0.0
    %543 = vmatpush1.msra.mxu0 %v141
    %544 = vmatprep.subr.mxu0 0.0
    %545 = vmatpush1.msra.mxu0 %v142
    %546 = vmatprep.subr.mxu0 0.0
    %547 = vmatpush1.msra.mxu0 %v143
    %548 = vmatprep.subr.mxu0 0.0
    %549 = vmatpush1.msra.mxu0 0.0
    %550 = vmatprep.subr.mxu0 0.0
    %551 = vmatpush1.msra.mxu0 0.0
    %552 = vmatprep.subr.mxu0 0.0
    %553 = vmatpush1.msra.mxu0 0.0
    %554 = vmatprep.subr.mxu0 0.0
    %555 = vmatpush1.msra.mxu0 0.0
    %556 = vmatprep.subr.mxu0 0.0
    %557 = vmatpush1.msra.mxu0 0.0
    %558 = vmatprep.subr.mxu0 0.0
    %559 = vmatpush1.msra.mxu0 0.0
    %560 = vmatprep.subr.mxu0 0.0
    %561 = vmatpush1.msra.mxu0 0.0
    %562 = vmatprep.subr.mxu0 0.0
    %563 = vmatpush1.msra.mxu0 0.0
    %564 = vmatprep.subr.mxu0 0.0
    %565 = vmatpush1.msra.mxu0 0.0
    %566 = vmatprep.subr.mxu0 0.0
    %567 = vmatpush1.msra.mxu0 0.0
    %568 = vmatprep.subr.mxu0 0.0
    %569 = vmatpush1.msra.mxu0 0.0
    %570 = vmatprep.subr.mxu0 0.0
    %571 = vmatpush1.msra.mxu0 0.0
    %572 = vmatprep.subr.mxu0 0.0
    %573 = vmatpush1.msra.mxu0 0.0
    %574 = vmatprep.subr.mxu0 0.0
    %575 = vmatpush1.msra.mxu0 0.0
    %576 = vmatprep.subr.mxu0 0.0
    %577 = vmatpush1.msra.mxu0 0.0
    %578 = vmatprep.subr.mxu0 0.0
    %579 = vmatpush1.msra.mxu0 0.0
    %580 = vmatprep.subr.mxu0 0.0
    %581 = vmatpush1.msra.mxu0 0.0
    %582 = vmatprep.subr.mxu0 0.0
    %583 = vmatpush1.msra.mxu0 0.0
    %584 = vmatprep.subr.mxu0 0.0
    %585 = vmatpush1.msra.mxu0 0.0
    %586 = vmatprep.subr.mxu0 0.0
    %587 = vmatpush1.msra.mxu0 0.0
    %588 = vmatprep.subr.mxu0 0.0
    %589 = vmatpush1.msra.mxu0 0.0
    %590 = vmatprep.subr.mxu0 0.0
    %591 = vmatpush1.msra.mxu0 0.0
    %592 = vmatprep.subr.mxu0 0.0
    %593 = vmatpush1.msra.mxu0 0.0
    %594 = vmatprep.subr.mxu0 0.0
    %595 = vmatpush1.msra.mxu0 0.0
    %596 = vmatprep.subr.mxu0 0.0
    %597 = vmatpush1.msra.mxu0 0.0
    %598 = vmatprep.subr.mxu0 0.0
    %599 = vmatpush1.msra.mxu0 0.0
    %600 = vmatprep.subr.mxu0 0.0
    %601 = vmatpush1.msra.mxu0 0.0
    %602 = vmatprep.subr.mxu0 0.0
    %603 = vmatpush1.msra.mxu0 0.0
    %604 = vmatprep.mubr.f32.mxu0 0.0
    %605 = vmatmul.mubr.f32.gmra.mrb[0].mxu0 %v538
    %v606 = vpop.f32.mrb[0].mxu0
    %v607 = vadd.f32 0.0, %v606
    %v608 = vpop.f32.mrb[0].mxu0
    %609 = vdwg.mxu0
    %v610 = vadd.f32 %v136, %v607
    %v611 = vmul.f32 %v610, 0.5
    %v612 = vtanh.pop %v611
    %v613 = vmul.f32 %v612, 0.5
    %v614 = vadd.f32 %v613, 0.5
    %v615 = vtanh.pop %v610
    %v616 = vmul.f32 %v614, %v528
    %618 = vrot.lane.b32.xlu0 %v615, 64
    %v619 = vpop.permute.xlu0 %618
    %v621 = vmul.f32 %v614, %v619
    %623 = vrot.lane.b32.xlu0 %v621, 32
    %v624 = vpop.permute.xlu0 %623
    %v626 = vadd.f32 %v616, %v624
    %v627 = vtanh.pop %v626
    %629 = vrot.lane.b32.xlu0 %v627, 64
    %v630 = vpop.permute.xlu0 %629
    %v632 = vmul.f32 %v614, %v630
    %634 = vrot.lane.b32.xlu0 %v632, 32
    %v635 = vpop.permute.xlu0 %634
    %v636 = vsel %vm144, %v635, 0
    %638 = vmatprep.subr.mxu0 0.0
    %639 = vmatpush1.msra.mxu0 %v140
    %640 = vmatprep.subr.mxu0 0.0
    %641 = vmatpush1.msra.mxu0 %v141
    %642 = vmatprep.subr.mxu0 0.0
    %643 = vmatpush1.msra.mxu0 %v142
    %644 = vmatprep.subr.mxu0 0.0
    %645 = vmatpush1.msra.mxu0 %v143
    %646 = vmatprep.subr.mxu0 0.0
    %647 = vmatpush1.msra.mxu0 0.0
    %648 = vmatprep.subr.mxu0 0.0
    %649 = vmatpush1.msra.mxu0 0.0
    %650 = vmatprep.subr.mxu0 0.0
    %651 = vmatpush1.msra.mxu0 0.0
    %652 = vmatprep.subr.mxu0 0.0
    %653 = vmatpush1.msra.mxu0 0.0
    %654 = vmatprep.subr.mxu0 0.0
    %655 = vmatpush1.msra.mxu0 0.0
    %656 = vmatprep.subr.mxu0 0.0
    %657 = vmatpush1.msra.mxu0 0.0
    %658 = vmatprep.subr.mxu0 0.0
    %659 = vmatpush1.msra.mxu0 0.0
    %660 = vmatprep.subr.mxu0 0.0
    %661 = vmatpush1.msra.mxu0 0.0
    %662 = vmatprep.subr.mxu0 0.0
    %663 = vmatpush1.msra.mxu0 0.0
    %664 = vmatprep.subr.mxu0 0.0
    %665 = vmatpush1.msra.mxu0 0.0
    %666 = vmatprep.subr.mxu0 0.0
    %667 = vmatpush1.msra.mxu0 0.0
    %668 = vmatprep.subr.mxu0 0.0
    %669 = vmatpush1.msra.mxu0 0.0
    %670 = vmatprep.subr.mxu0 0.0
    %671 = vmatpush1.msra.mxu0 0.0
    %672 = vmatprep.subr.mxu0 0.0
    %673 = vmatpush1.msra.mxu0 0.0
    %674 = vmatprep.subr.mxu0 0.0
    %675 = vmatpush1.msra.mxu0 0.0
    %676 = vmatprep.subr.mxu0 0.0
    %677 = vmatpush1.msra.mxu0 0.0
    %678 = vmatprep.subr.mxu0 0.0
    %679 = vmatpush1.msra.mxu0 0.0
    %680 = vmatprep.subr.mxu0 0.0
    %681 = vmatpush1.msra.mxu0 0.0
    %682 = vmatprep.subr.mxu0 0.0
    %683 = vmatpush1.msra.mxu0 0.0
    %684 = vmatprep.subr.mxu0 0.0
    %685 = vmatpush1.msra.mxu0 0.0
    %686 = vmatprep.subr.mxu0 0.0
    %687 = vmatpush1.msra.mxu0 0.0
    %688 = vmatprep.subr.mxu0 0.0
    %689 = vmatpush1.msra.mxu0 0.0
    %690 = vmatprep.subr.mxu0 0.0
    %691 = vmatpush1.msra.mxu0 0.0
    %692 = vmatprep.subr.mxu0 0.0
    %693 = vmatpush1.msra.mxu0 0.0
    %694 = vmatprep.subr.mxu0 0.0
    %695 = vmatpush1.msra.mxu0 0.0
    %696 = vmatprep.subr.mxu0 0.0
    %697 = vmatpush1.msra.mxu0 0.0
    %698 = vmatprep.subr.mxu0 0.0
    %699 = vmatpush1.msra.mxu0 0.0
    %700 = vmatprep.subr.mxu0 0.0
    %701 = vmatpush1.msra.mxu0 0.0
    %702 = vmatprep.mubr.f32.mxu0 0.0
    %703 = vmatmul.mubr.f32.gmra.mrb[0].mxu0 %v636
    %v704 = vpop.f32.mrb[0].mxu0
    %v705 = vadd.f32 0.0, %v704
    %v706 = vpop.f32.mrb[0].mxu0
    %707 = vdwg.mxu0
    %v708 = vadd.f32 %v137, %v705
    %v709 = vmul.f32 %v708, 0.5
    %v710 = vtanh.pop %v709
    %v711 = vmul.f32 %v710, 0.5
    %v712 = vadd.f32 %v711, 0.5
    %v713 = vtanh.pop %v708
    %v714 = vmul.f32 %v712, %v626
    %716 = vrot.lane.b32.xlu0 %v713, 64
    %v717 = vpop.permute.xlu0 %716
    %v719 = vmul.f32 %v712, %v717
    %721 = vrot.lane.b32.xlu0 %v719, 32
    %v722 = vpop.permute.xlu0 %721
    %v724 = vadd.f32 %v714, %v722
    %v725 = vtanh.pop %v724
    %727 = vrot.lane.b32.xlu0 %v725, 64
    %v728 = vpop.permute.xlu0 %727
    %v730 = vmul.f32 %v712, %v728
    %732 = vrot.lane.b32.xlu0 %v730, 32
    %v733 = vpop.permute.xlu0 %732
    %v734 = vsel %vm144, %v733, 0
    %736 = vmatprep.subr.mxu0 0.0
    %737 = vmatpush1.msra.mxu0 %v140
    %738 = vmatprep.subr.mxu0 0.0
    %739 = vmatpush1.msra.mxu0 %v141
    %740 = vmatprep.subr.mxu0 0.0
    %741 = vmatpush1.msra.mxu0 %v142
    %742 = vmatprep.subr.mxu0 0.0
    %743 = vmatpush1.msra.mxu0 %v143
    %744 = vmatprep.subr.mxu0 0.0
    %745 = vmatpush1.msra.mxu0 0.0
    %746 = vmatprep.subr.mxu0 0.0
    %747 = vmatpush1.msra.mxu0 0.0
    %748 = vmatprep.subr.mxu0 0.0
    %749 = vmatpush1.msra.mxu0 0.0
    %750 = vmatprep.subr.mxu0 0.0
    %751 = vmatpush1.msra.mxu0 0.0
    %752 = vmatprep.subr.mxu0 0.0
    %753 = vmatpush1.msra.mxu0 0.0
    %754 = vmatprep.subr.mxu0 0.0
    %755 = vmatpush1.msra.mxu0 0.0
    %756 = vmatprep.subr.mxu0 0.0
    %757 = vmatpush1.msra.mxu0 0.0
    %758 = vmatprep.subr.mxu0 0.0
    %759 = vmatpush1.msra.mxu0 0.0
    %760 = vmatprep.subr.mxu0 0.0
    %761 = vmatpush1.msra.mxu0 0.0
    %762 = vmatprep.subr.mxu0 0.0
    %763 = vmatpush1.msra.mxu0 0.0
    %764 = vmatprep.subr.mxu0 0.0
    %765 = vmatpush1.msra.mxu0 0.0
    %766 = vmatprep.subr.mxu0 0.0
    %767 = vmatpush1.msra.mxu0 0.0
    %768 = vmatprep.subr.mxu0 0.0
    %769 = vmatpush1.msra.mxu0 0.0
    %770 = vmatprep.subr.mxu0 0.0
    %771 = vmatpush1.msra.mxu0 0.0
    %772 = vmatprep.subr.mxu0 0.0
    %773 = vmatpush1.msra.mxu0 0.0
    %774 = vmatprep.subr.mxu0 0.0
    %775 = vmatpush1.msra.mxu0 0.0
    %776 = vmatprep.subr.mxu0 0.0
    %777 = vmatpush1.msra.mxu0 0.0
    %778 = vmatprep.subr.mxu0 0.0
    %779 = vmatpush1.msra.mxu0 0.0
    %780 = vmatprep.subr.mxu0 0.0
    %781 = vmatpush1.msra.mxu0 0.0
    %782 = vmatprep.subr.mxu0 0.0
    %783 = vmatpush1.msra.mxu0 0.0
    %784 = vmatprep.subr.mxu0 0.0
    %785 = vmatpush1.msra.mxu0 0.0
    %786 = vmatprep.subr.mxu0 0.0
    %787 = vmatpush1.msra.mxu0 0.0
    %788 = vmatprep.subr.mxu0 0.0
    %789 = vmatpush1.msra.mxu0 0.0
    %790 = vmatprep.subr.mxu0 0.0
    %791 = vmatpush1.msra.mxu0 0.0
    %792 = vmatprep.subr.mxu0 0.0
    %793 = vmatpush1.msra.mxu0 0.0
    %794 = vmatprep.subr.mxu0 0.0
    %795 = vmatpush1.msra.mxu0 0.0
    %796 = vmatprep.subr.mxu0 0.0
    %797 = vmatpush1.msra.mxu0 0.0
    %798 = vmatprep.subr.mxu0 0.0
    %799 = vmatpush1.msra.mxu0 0.0
    %800 = vmatprep.mubr.f32.mxu0 0.0
    %801 = vmatmul.mubr.f32.gmra.mrb[0].mxu0 %v734
    %v802 = vpop.f32.mrb[0].mxu0
    %v803 = vadd.f32 0.0, %v802
    %v804 = vpop.f32.mrb[0].mxu0
    %805 = vdwg.mxu0
    %v806 = vadd.f32 %v138, %v803
    %v807 = vmul.f32 %v806, 0.5
    %v808 = vtanh.pop %v807
    %v809 = vmul.f32 %v808, 0.5
    %v810 = vadd.f32 %v809, 0.5
    %v811 = vtanh.pop %v806
    %v812 = vmul.f32 %v810, %v724
    %814 = vrot.lane.b32.xlu0 %v811, 64
    %v815 = vpop.permute.xlu0 %814
    %v817 = vmul.f32 %v810, %v815
    %819 = vrot.lane.b32.xlu0 %v817, 32
    %v820 = vpop.permute.xlu0 %819
    %v822 = vadd.f32 %v812, %v820
    %v823 = vtanh.pop %v822
    %825 = vrot.lane.b32.xlu0 %v823, 64
    %v826 = vpop.permute.xlu0 %825
    %v828 = vmul.f32 %v810, %v826
    %830 = vrot.lane.b32.xlu0 %v828, 32
    %v831 = vpop.permute.xlu0 %830
    %v832 = vsel %vm144, %v831, 0
    %834 = vmatprep.subr.mxu0 0.0
    %835 = vmatpush1.msra.mxu0 %v140
    %836 = vmatprep.subr.mxu0 0.0
    %837 = vmatpush1.msra.mxu0 %v141
    %838 = vmatprep.subr.mxu0 0.0
    %839 = vmatpush1.msra.mxu0 %v142
    %840 = vmatprep.subr.mxu0 0.0
    %841 = vmatpush1.msra.mxu0 %v143
    %842 = vmatprep.subr.mxu0 0.0
    %843 = vmatpush1.msra.mxu0 0.0
    %844 = vmatprep.subr.mxu0 0.0
    %845 = vmatpush1.msra.mxu0 0.0
    %846 = vmatprep.subr.mxu0 0.0
    %847 = vmatpush1.msra.mxu0 0.0
    %848 = vmatprep.subr.mxu0 0.0
    %849 = vmatpush1.msra.mxu0 0.0
    %850 = vmatprep.subr.mxu0 0.0
    %851 = vmatpush1.msra.mxu0 0.0
    %852 = vmatprep.subr.mxu0 0.0
    %853 = vmatpush1.msra.mxu0 0.0
    %854 = vmatprep.subr.mxu0 0.0
    %855 = vmatpush1.msra.mxu0 0.0
    %856 = vmatprep.subr.mxu0 0.0
    %857 = vmatpush1.msra.mxu0 0.0
    %858 = vmatprep.subr.mxu0 0.0
    %859 = vmatpush1.msra.mxu0 0.0
    %860 = vmatprep.subr.mxu0 0.0
    %861 = vmatpush1.msra.mxu0 0.0
    %862 = vmatprep.subr.mxu0 0.0
    %863 = vmatpush1.msra.mxu0 0.0
    %864 = vmatprep.subr.mxu0 0.0
    %865 = vmatpush1.msra.mxu0 0.0
    %866 = vmatprep.subr.mxu0 0.0
    %867 = vmatpush1.msra.mxu0 0.0
    %868 = vmatprep.subr.mxu0 0.0
    %869 = vmatpush1.msra.mxu0 0.0
    %870 = vmatprep.subr.mxu0 0.0
    %871 = vmatpush1.msra.mxu0 0.0
    %872 = vmatprep.subr.mxu0 0.0
    %873 = vmatpush1.msra.mxu0 0.0
    %874 = vmatprep.subr.mxu0 0.0
    %875 = vmatpush1.msra.mxu0 0.0
    %876 = vmatprep.subr.mxu0 0.0
    %877 = vmatpush1.msra.mxu0 0.0
    %878 = vmatprep.subr.mxu0 0.0
    %879 = vmatpush1.msra.mxu0 0.0
    %880 = vmatprep.subr.mxu0 0.0
    %881 = vmatpush1.msra.mxu0 0.0
    %882 = vmatprep.subr.mxu0 0.0
    %883 = vmatpush1.msra.mxu0 0.0
    %884 = vmatprep.subr.mxu0 0.0
    %885 = vmatpush1.msra.mxu0 0.0
    %886 = vmatprep.subr.mxu0 0.0
    %887 = vmatpush1.msra.mxu0 0.0
    %888 = vmatprep.subr.mxu0 0.0
    %889 = vmatpush1.msra.mxu0 0.0
    %890 = vmatprep.subr.mxu0 0.0
    %891 = vmatpush1.msra.mxu0 0.0
    %892 = vmatprep.subr.mxu0 0.0
    %893 = vmatpush1.msra.mxu0 0.0
    %894 = vmatprep.subr.mxu0 0.0
    %895 = vmatpush1.msra.mxu0 0.0
    %896 = vmatprep.subr.mxu0 0.0
    %897 = vmatpush1.msra.mxu0 0.0
    %898 = vmatprep.mubr.f32.mxu0 0.0
    %899 = vmatmul.mubr.f32.gmra.mrb[0].mxu0 %v832
    %v900 = vpop.f32.mrb[0].mxu0
    %v901 = vadd.f32 0.0, %v900
    %v902 = vpop.f32.mrb[0].mxu0
    %903 = vdwg.mxu0
    %v904 = vadd.f32 %v139, %v901
    %v905 = vmul.f32 %v904, 0.5
    %v906 = vtanh.pop %v905
    %v907 = vmul.f32 %v906, 0.5
    %v908 = vadd.f32 %v907, 0.5
    %v909 = vtanh.pop %v904
    %v910 = vmul.f32 %v908, %v822
    %912 = vrot.lane.b32.xlu0 %v909, 64
    %v913 = vpop.permute.xlu0 %912
    %v915 = vmul.f32 %v908, %v913
    %917 = vrot.lane.b32.xlu0 %v915, 32
    %v918 = vpop.permute.xlu0 %917
    %v920 = vadd.f32 %v910, %v918
    %v921 = vtanh.pop %v920
    %923 = vrot.lane.b32.xlu0 %v921, 64
    %v924 = vpop.permute.xlu0 %923
    %v926 = vmul.f32 %v908, %v924
    %v927 = vld [vmem:[#allocation4] sm:$0xff]
    %v928 = vld [vmem:[#allocation4 + $0x8] sm:$0xff]
    %v929 = vld [vmem:[#allocation4 + $0x10] sm:$0xff]
    %v930 = vld [vmem:[#allocation4 + $0x18] sm:$0xff]
    %v931 = vld [vmem:[%s6] sm:$0x1]
    %v933 = vlaneseq
    %v934 = vshrl.u32 %v933, 7
    %v935 = vsub.s32 0, %v934
    %v936 = vrot.slane %v931, %v935
    %939 = vrot.lane.b32.xlu0 %v926, 32
    %v940 = vpop.permute.xlu0 %939
    %v941 = vsel %vm144, %v940, 0
    %943 = vmatprep.subr.mxu0 0.0
    %944 = vmatpush1.msra.mxu0 %v927
    %945 = vmatprep.subr.mxu0 0.0
    %946 = vmatpush1.msra.mxu0 %v928
    %947 = vmatprep.subr.mxu0 0.0
    %948 = vmatpush1.msra.mxu0 %v929
    %949 = vmatprep.subr.mxu0 0.0
    %950 = vmatpush1.msra.mxu0 %v930
    %951 = vmatprep.subr.mxu0 0.0
    %952 = vmatpush1.msra.mxu0 0.0
    %953 = vmatprep.subr.mxu0 0.0
    %954 = vmatpush1.msra.mxu0 0.0
    %955 = vmatprep.subr.mxu0 0.0
    %956 = vmatpush1.msra.mxu0 0.0
    %957 = vmatprep.subr.mxu0 0.0
    %958 = vmatpush1.msra.mxu0 0.0
    %959 = vmatprep.subr.mxu0 0.0
    %960 = vmatpush1.msra.mxu0 0.0
    %961 = vmatprep.subr.mxu0 0.0
    %962 = vmatpush1.msra.mxu0 0.0
    %963 = vmatprep.subr.mxu0 0.0
    %964 = vmatpush1.msra.mxu0 0.0
    %965 = vmatprep.subr.mxu0 0.0
    %966 = vmatpush1.msra.mxu0 0.0
    %967 = vmatprep.subr.mxu0 0.0
    %968 = vmatpush1.msra.mxu0 0.0
    %969 = vmatprep.subr.mxu0 0.0
    %970 = vmatpush1.msra.mxu0 0.0
    %971 = vmatprep.subr.mxu0 0.0
    %972 = vmatpush1.msra.mxu0 0.0
    %973 = vmatprep.subr.mxu0 0.0
    %974 = vmatpush1.msra.mxu0 0.0
    %975 = vmatprep.subr.mxu0 0.0
    %976 = vmatpush1.msra.mxu0 0.0
    %977 = vmatprep.subr.mxu0 0.0
    %978 = vmatpush1.msra.mxu0 0.0
    %979 = vmatprep.subr.mxu0 0.0
    %980 = vmatpush1.msra.mxu0 0.0
    %981 = vmatprep.subr.mxu0 0.0
    %982 = vmatpush1.msra.mxu0 0.0
    %983 = vmatprep.subr.mxu0 0.0
    %984 = vmatpush1.msra.mxu0 0.0
    %985 = vmatprep.subr.mxu0 0.0
    %986 = vmatpush1.msra.mxu0 0.0
    %987 = vmatprep.subr.mxu0 0.0
    %988 = vmatpush1.msra.mxu0 0.0
    %989 = vmatprep.subr.mxu0 0.0
    %990 = vmatpush1.msra.mxu0 0.0
    %991 = vmatprep.subr.mxu0 0.0
    %992 = vmatpush1.msra.mxu0 0.0
    %993 = vmatprep.subr.mxu0 0.0
    %994 = vmatpush1.msra.mxu0 0.0
    %995 = vmatprep.subr.mxu0 0.0
    %996 = vmatpush1.msra.mxu0 0.0
    %997 = vmatprep.subr.mxu0 0.0
    %998 = vmatpush1.msra.mxu0 0.0
    %999 = vmatprep.subr.mxu0 0.0
    %1000 = vmatpush1.msra.mxu0 0.0
    %1001 = vmatprep.subr.mxu0 0.0
    %1002 = vmatpush1.msra.mxu0 0.0
    %1003 = vmatprep.subr.mxu0 0.0
    %1004 = vmatpush1.msra.mxu0 0.0
    %1005 = vmatprep.subr.mxu0 0.0
    %1006 = vmatpush1.msra.mxu0 0.0
    %1007 = vmatprep.mubr.f32.mxu0 0.0
    %1008 = vmatmul.mubr.f32.gmra.mrb[0].mxu0 %v941
    %v1009 = vpop.f32.mrb[0].mxu0
    %v1010 = vadd.f32 %v936, %v1009
    %v1011 = vpop.f32.mrb[0].mxu0
    %1012 = vdwg.mxu0
    %v1013 = vld [vmem:[#allocation6] sm:$0xff]
    %v1014 = vld [vmem:[#allocation6 + $0x8] sm:$0xff]
    %v1015 = vld [vmem:[#allocation6 + $0x10] sm:$0xff]
    %v1016 = vld [vmem:[#allocation6 + $0x18] sm:$0xff]
    %1017 = vmatprep.subr.mxu0 0.0
    %1018 = vmatpush1.msra.mxu0 %v1013
    %1019 = vmatprep.subr.mxu0 0.0
    %1020 = vmatpush1.msra.mxu0 %v1014
    %1021 = vmatprep.subr.mxu0 0.0
    %1022 = vmatpush1.msra.mxu0 %v1015
    %1023 = vmatprep.subr.mxu0 0.0
    %1024 = vmatpush1.msra.mxu0 %v1016
    %1025 = vmatprep.subr.mxu0 0.0
    %1026 = vmatpush1.msra.mxu0 0.0
    %1027 = vmatprep.subr.mxu0 0.0
    %1028 = vmatpush1.msra.mxu0 0.0
    %1029 = vmatprep.subr.mxu0 0.0
    %1030 = vmatpush1.msra.mxu0 0.0
    %1031 = vmatprep.subr.mxu0 0.0
    %1032 = vmatpush1.msra.mxu0 0.0
    %1033 = vmatprep.subr.mxu0 0.0
    %1034 = vmatpush1.msra.mxu0 0.0
    %1035 = vmatprep.subr.mxu0 0.0
    %1036 = vmatpush1.msra.mxu0 0.0
    %1037 = vmatprep.subr.mxu0 0.0
    %1038 = vmatpush1.msra.mxu0 0.0
    %1039 = vmatprep.subr.mxu0 0.0
    %1040 = vmatpush1.msra.mxu0 0.0
    %1041 = vmatprep.subr.mxu0 0.0
    %1042 = vmatpush1.msra.mxu0 0.0
    %1043 = vmatprep.subr.mxu0 0.0
    %1044 = vmatpush1.msra.mxu0 0.0
    %1045 = vmatprep.subr.mxu0 0.0
    %1046 = vmatpush1.msra.mxu0 0.0
    %1047 = vmatprep.subr.mxu0 0.0
    %1048 = vmatpush1.msra.mxu0 0.0
    %1049 = vmatprep.subr.mxu0 0.0
    %1050 = vmatpush1.msra.mxu0 0.0
    %1051 = vmatprep.subr.mxu0 0.0
    %1052 = vmatpush1.msra.mxu0 0.0
    %1053 = vmatprep.subr.mxu0 0.0
    %1054 = vmatpush1.msra.mxu0 0.0
    %1055 = vmatprep.subr.mxu0 0.0
    %1056 = vmatpush1.msra.mxu0 0.0
    %1057 = vmatprep.subr.mxu0 0.0
    %1058 = vmatpush1.msra.mxu0 0.0
    %1059 = vmatprep.subr.mxu0 0.0
    %1060 = vmatpush1.msra.mxu0 0.0
    %1061 = vmatprep.subr.mxu0 0.0
    %1062 = vmatpush1.msra.mxu0 0.0
    %1063 = vmatprep.subr.mxu0 0.0
    %1064 = vmatpush1.msra.mxu0 0.0
    %1065 = vmatprep.subr.mxu0 0.0
    %1066 = vmatpush1.msra.mxu0 0.0
    %1067 = vmatprep.subr.mxu0 0.0
    %1068 = vmatpush1.msra.mxu0 0.0
    %1069 = vmatprep.subr.mxu0 0.0
    %1070 = vmatpush1.msra.mxu0 0.0
    %1071 = vmatprep.subr.mxu0 0.0
    %1072 = vmatpush1.msra.mxu0 0.0
    %1073 = vmatprep.subr.mxu0 0.0
    %1074 = vmatpush1.msra.mxu0 0.0
    %1075 = vmatprep.subr.mxu0 0.0
    %1076 = vmatpush1.msra.mxu0 0.0
    %1077 = vmatprep.subr.mxu0 0.0
    %1078 = vmatpush1.msra.mxu0 0.0
    %1079 = vmatprep.subr.mxu0 0.0
    %1080 = vmatpush1.msra.mxu0 0.0
    %1081 = vmatprep.mubr.f32.mxu0 0.0
    %1082 = vmatmul.mubr.f32.gmra.mrb[0].mxu0 %v146
    %v1083 = vpop.f32.mrb[0].mxu0
    %v1084 = vadd.f32 0.0, %v1083
    %v1085 = vpop.f32.mrb[0].mxu0
    %1086 = vdwg.mxu0
    %v1087 = vadd.f32 %v1010, %v1084
    %v1088 = vmul.f32 %v1087, 0.5
    %v1089 = vtanh.pop %v1088
    %v1090 = vmul.f32 %v1089, 0.5
    %v1091 = vadd.f32 %v1090, 0.5
    %v1092 = vtanh.pop %v1087
    %v1093 = vmul.f32 %v1091, 0.0
    %1095 = vrot.lane.b32.xlu0 %v1092, 64
    %v1096 = vpop.permute.xlu0 %1095
    %v1098 = vmul.f32 %v1091, %v1096
    %1100 = vrot.lane.b32.xlu0 %v1098, 32
    %v1101 = vpop.permute.xlu0 %1100
    %v1103 = vadd.f32 %v1093, %v1101
    %v1104 = vtanh.pop %v1103
    %1106 = vrot.lane.b32.xlu0 %v1104, 64
    %v1107 = vpop.permute.xlu0 %1106
    %v1109 = vmul.f32 %v1091, %v1107
    %1111 = vrot.lane.b32.xlu0 %v1109, 32
    %v1112 = vpop.permute.xlu0 %1111
    %vm1114 = vcmask 254976
    %1115 = vst.msk [vmem:[#allocation2] sm:$0x3] %vm1114, %v1112
    %v1116 = vsel %vm144, %v1112, 0
    %1118 = vmatprep.subr.mxu0 0.0
    %1119 = vmatpush1.msra.mxu0 %v1013
    %1120 = vmatprep.subr.mxu0 0.0
    %1121 = vmatpush1.msra.mxu0 %v1014
    %1122 = vmatprep.subr.mxu0 0.0
    %1123 = vmatpush1.msra.mxu0 %v1015
    %1124 = vmatprep.subr.mxu0 0.0
    %1125 = vmatpush1.msra.mxu0 %v1016
    %1126 = vmatprep.subr.mxu0 0.0
    %1127 = vmatpush1.msra.mxu0 0.0
    %1128 = vmatprep.subr.mxu0 0.0
    %1129 = vmatpush1.msra.mxu0 0.0
    %1130 = vmatprep.subr.mxu0 0.0
    %1131 = vmatpush1.msra.mxu0 0.0
    %1132 = vmatprep.subr.mxu0 0.0
    %1133 = vmatpush1.msra.mxu0 0.0
    %1134 = vmatprep.subr.mxu0 0.0
    %1135 = vmatpush1.msra.mxu0 0.0
    %1136 = vmatprep.subr.mxu0 0.0
    %1137 = vmatpush1.msra.mxu0 0.0
    %1138 = vmatprep.subr.mxu0 0.0
    %1139 = vmatpush1.msra.mxu0 0.0
    %1140 = vmatprep.subr.mxu0 0.0
    %1141 = vmatpush1.msra.mxu0 0.0
    %1142 = vmatprep.subr.mxu0 0.0
    %1143 = vmatpush1.msra.mxu0 0.0
    %1144 = vmatprep.subr.mxu0 0.0
    %1145 = vmatpush1.msra.mxu0 0.0
    %1146 = vmatprep.subr.mxu0 0.0
    %1147 = vmatpush1.msra.mxu0 0.0
    %1148 = vmatprep.subr.mxu0 0.0
    %1149 = vmatpush1.msra.mxu0 0.0
    %1150 = vmatprep.subr.mxu0 0.0
    %1151 = vmatpush1.msra.mxu0 0.0
    %1152 = vmatprep.subr.mxu0 0.0
    %1153 = vmatpush1.msra.mxu0 0.0
    %1154 = vmatprep.subr.mxu0 0.0
    %1155 = vmatpush1.msra.mxu0 0.0
    %1156 = vmatprep.subr.mxu0 0.0
    %1157 = vmatpush1.msra.mxu0 0.0
    %1158 = vmatprep.subr.mxu0 0.0
    %1159 = vmatpush1.msra.mxu0 0.0
    %1160 = vmatprep.subr.mxu0 0.0
    %1161 = vmatpush1.msra.mxu0 0.0
    %1162 = vmatprep.subr.mxu0 0.0
    %1163 = vmatpush1.msra.mxu0 0.0
    %1164 = vmatprep.subr.mxu0 0.0
    %1165 = vmatpush1.msra.mxu0 0.0
    %1166 = vmatprep.subr.mxu0 0.0
    %1167 = vmatpush1.msra.mxu0 0.0
    %1168 = vmatprep.subr.mxu0 0.0
    %1169 = vmatpush1.msra.mxu0 0.0
    %1170 = vmatprep.subr.mxu0 0.0
    %1171 = vmatpush1.msra.mxu0 0.0
    %1172 = vmatprep.subr.mxu0 0.0
    %1173 = vmatpush1.msra.mxu0 0.0
    %1174 = vmatprep.subr.mxu0 0.0
    %1175 = vmatpush1.msra.mxu0 0.0
    %1176 = vmatprep.subr.mxu0 0.0
    %1177 = vmatpush1.msra.mxu0 0.0
    %1178 = vmatprep.subr.mxu0 0.0
    %1179 = vmatpush1.msra.mxu0 0.0
    %1180 = vmatprep.subr.mxu0 0.0
    %1181 = vmatpush1.msra.mxu0 0.0
    %1182 = vmatprep.mubr.f32.mxu0 0.0
    %1183 = vmatmul.mubr.f32.gmra.mrb[0].mxu0 %v1116
    %v1184 = vpop.f32.mrb[0].mxu0
    %v1185 = vadd.f32 0.0, %v1184
    %v1186 = vpop.f32.mrb[0].mxu0
    %1187 = vdwg.mxu0
    %v1188 = vadd.f32 %v1010, %v1185
    %v1189 = vmul.f32 %v1188, 0.5
    %v1190 = vtanh.pop %v1189
    %v1191 = vmul.f32 %v1190, 0.5
    %v1192 = vadd.f32 %v1191, 0.5
    %v1193 = vtanh.pop %v1188
    %v1194 = vmul.f32 %v1192, %v1103
    %1196 = vrot.lane.b32.xlu0 %v1193, 64
    %v1197 = vpop.permute.xlu0 %1196
    %v1199 = vmul.f32 %v1192, %v1197
    %1201 = vrot.lane.b32.xlu0 %v1199, 32
    %v1202 = vpop.permute.xlu0 %1201
    %v1204 = vadd.f32 %v1194, %v1202
    %v1205 = vtanh.pop %v1204
    %1207 = vrot.lane.b32.xlu0 %v1205, 64
    %v1208 = vpop.permute.xlu0 %1207
    %v1210 = vmul.f32 %v1192, %v1208
    %1212 = vrot.lane.b32.xlu0 %v1210, 32
    %v1213 = vpop.permute.xlu0 %1212
    %s1215 = scalar_lea.vmem [#allocation2], 2
    %1216 = vst.msk [vmem:[%s1215] sm:$0x3] %vm1114, %v1213
    %v1217 = vsel %vm144, %v1213, 0
    %1219 = vmatprep.subr.mxu0 0.0
    %1220 = vmatpush1.msra.mxu0 %v1013
    %1221 = vmatprep.subr.mxu0 0.0
    %1222 = vmatpush1.msra.mxu0 %v1014
    %1223 = vmatprep.subr.mxu0 0.0
    %1224 = vmatpush1.msra.mxu0 %v1015
    %1225 = vmatprep.subr.mxu0 0.0
    %1226 = vmatpush1.msra.mxu0 %v1016
    %1227 = vmatprep.subr.mxu0 0.0
    %1228 = vmatpush1.msra.mxu0 0.0
    %1229 = vmatprep.subr.mxu0 0.0
    %1230 = vmatpush1.msra.mxu0 0.0
    %1231 = vmatprep.subr.mxu0 0.0
    %1232 = vmatpush1.msra.mxu0 0.0
    %1233 = vmatprep.subr.mxu0 0.0
    %1234 = vmatpush1.msra.mxu0 0.0
    %1235 = vmatprep.subr.mxu0 0.0
    %1236 = vmatpush1.msra.mxu0 0.0
    %1237 = vmatprep.subr.mxu0 0.0
    %1238 = vmatpush1.msra.mxu0 0.0
    %1239 = vmatprep.subr.mxu0 0.0
    %1240 = vmatpush1.msra.mxu0 0.0
    %1241 = vmatprep.subr.mxu0 0.0
    %1242 = vmatpush1.msra.mxu0 0.0
    %1243 = vmatprep.subr.mxu0 0.0
    %1244 = vmatpush1.msra.mxu0 0.0
    %1245 = vmatprep.subr.mxu0 0.0
    %1246 = vmatpush1.msra.mxu0 0.0
    %1247 = vmatprep.subr.mxu0 0.0
    %1248 = vmatpush1.msra.mxu0 0.0
    %1249 = vmatprep.subr.mxu0 0.0
    %1250 = vmatpush1.msra.mxu0 0.0
    %1251 = vmatprep.subr.mxu0 0.0
    %1252 = vmatpush1.msra.mxu0 0.0
    %1253 = vmatprep.subr.mxu0 0.0
    %1254 = vmatpush1.msra.mxu0 0.0
    %1255 = vmatprep.subr.mxu0 0.0
    %1256 = vmatpush1.msra.mxu0 0.0
    %1257 = vmatprep.subr.mxu0 0.0
    %1258 = vmatpush1.msra.mxu0 0.0
    %1259 = vmatprep.subr.mxu0 0.0
    %1260 = vmatpush1.msra.mxu0 0.0
    %1261 = vmatprep.subr.mxu0 0.0
    %1262 = vmatpush1.msra.mxu0 0.0
    %1263 = vmatprep.subr.mxu0 0.0
    %1264 = vmatpush1.msra.mxu0 0.0
    %1265 = vmatprep.subr.mxu0 0.0
    %1266 = vmatpush1.msra.mxu0 0.0
    %1267 = vmatprep.subr.mxu0 0.0
    %1268 = vmatpush1.msra.mxu0 0.0
    %1269 = vmatprep.subr.mxu0 0.0
    %1270 = vmatpush1.msra.mxu0 0.0
    %1271 = vmatprep.subr.mxu0 0.0
    %1272 = vmatpush1.msra.mxu0 0.0
    %1273 = vmatprep.subr.mxu0 0.0
    %1274 = vmatpush1.msra.mxu0 0.0
    %1275 = vmatprep.subr.mxu0 0.0
    %1276 = vmatpush1.msra.mxu0 0.0
    %1277 = vmatprep.subr.mxu0 0.0
    %1278 = vmatpush1.msra.mxu0 0.0
    %1279 = vmatprep.subr.mxu0 0.0
    %1280 = vmatpush1.msra.mxu0 0.0
    %1281 = vmatprep.subr.mxu0 0.0
    %1282 = vmatpush1.msra.mxu0 0.0
    %1283 = vmatprep.mubr.f32.mxu0 0.0
    %1284 = vmatmul.mubr.f32.gmra.mrb[0].mxu0 %v1217
    %v1285 = vpop.f32.mrb[0].mxu0
    %v1286 = vadd.f32 0.0, %v1285
    %v1287 = vpop.f32.mrb[0].mxu0
    %1288 = vdwg.mxu0
    %v1289 = vadd.f32 %v1010, %v1286
    %v1290 = vmul.f32 %v1289, 0.5
    %v1291 = vtanh.pop %v1290
    %v1292 = vmul.f32 %v1291, 0.5
    %v1293 = vadd.f32 %v1292, 0.5
    %v1294 = vtanh.pop %v1289
    %v1295 = vmul.f32 %v1293, %v1204
    %1297 = vrot.lane.b32.xlu0 %v1294, 64
    %v1298 = vpop.permute.xlu0 %1297
    %v1300 = vmul.f32 %v1293, %v1298
    %1302 = vrot.lane.b32.xlu0 %v1300, 32
    %v1303 = vpop.permute.xlu0 %1302
    %v1305 = vadd.f32 %v1295, %v1303
    %v1306 = vtanh.pop %v1305
    %1308 = vrot.lane.b32.xlu0 %v1306, 64
    %v1309 = vpop.permute.xlu0 %1308
    %v1311 = vmul.f32 %v1293, %v1309
    %1313 = vrot.lane.b32.xlu0 %v1311, 32
    %v1314 = vpop.permute.xlu0 %1313
    %s1316 = scalar_lea.vmem [#allocation2], 4
    %1317 = vst.msk [vmem:[%s1316] sm:$0x3] %vm1114, %v1314
    %v1318 = vsel %vm144, %v1314, 0
    %1320 = vmatprep.subr.mxu0 0.0
    %1321 = vmatpush1.msra.mxu0 %v1013
    %1322 = vmatprep.subr.mxu0 0.0
    %1323 = vmatpush1.msra.mxu0 %v1014
    %1324 = vmatprep.subr.mxu0 0.0
    %1325 = vmatpush1.msra.mxu0 %v1015
    %1326 = vmatprep.subr.mxu0 0.0
    %1327 = vmatpush1.msra.mxu0 %v1016
    %1328 = vmatprep.subr.mxu0 0.0
    %1329 = vmatpush1.msra.mxu0 0.0
    %1330 = vmatprep.subr.mxu0 0.0
    %1331 = vmatpush1.msra.mxu0 0.0
    %1332 = vmatprep.subr.mxu0 0.0
    %1333 = vmatpush1.msra.mxu0 0.0
    %1334 = vmatprep.subr.mxu0 0.0
    %1335 = vmatpush1.msra.mxu0 0.0
    %1336 = vmatprep.subr.mxu0 0.0
    %1337 = vmatpush1.msra.mxu0 0.0
    %1338 = vmatprep.subr.mxu0 0.0
    %1339 = vmatpush1.msra.mxu0 0.0
    %1340 = vmatprep.subr.mxu0 0.0
    %1341 = vmatpush1.msra.mxu0 0.0
    %1342 = vmatprep.subr.mxu0 0.0
    %1343 = vmatpush1.msra.mxu0 0.0
    %1344 = vmatprep.subr.mxu0 0.0
    %1345 = vmatpush1.msra.mxu0 0.0
    %1346 = vmatprep.subr.mxu0 0.0
    %1347 = vmatpush1.msra.mxu0 0.0
    %1348 = vmatprep.subr.mxu0 0.0
    %1349 = vmatpush1.msra.mxu0 0.0
    %1350 = vmatprep.subr.mxu0 0.0
    %1351 = vmatpush1.msra.mxu0 0.0
    %1352 = vmatprep.subr.mxu0 0.0
    %1353 = vmatpush1.msra.mxu0 0.0
    %1354 = vmatprep.subr.mxu0 0.0
    %1355 = vmatpush1.msra.mxu0 0.0
    %1356 = vmatprep.subr.mxu0 0.0
    %1357 = vmatpush1.msra.mxu0 0.0
    %1358 = vmatprep.subr.mxu0 0.0
    %1359 = vmatpush1.msra.mxu0 0.0
    %1360 = vmatprep.subr.mxu0 0.0
    %1361 = vmatpush1.msra.mxu0 0.0
    %1362 = vmatprep.subr.mxu0 0.0
    %1363 = vmatpush1.msra.mxu0 0.0
    %1364 = vmatprep.subr.mxu0 0.0
    %1365 = vmatpush1.msra.mxu0 0.0
    %1366 = vmatprep.subr.mxu0 0.0
    %1367 = vmatpush1.msra.mxu0 0.0
    %1368 = vmatprep.subr.mxu0 0.0
    %1369 = vmatpush1.msra.mxu0 0.0
    %1370 = vmatprep.subr.mxu0 0.0
    %1371 = vmatpush1.msra.mxu0 0.0
    %1372 = vmatprep.subr.mxu0 0.0
    %1373 = vmatpush1.msra.mxu0 0.0
    %1374 = vmatprep.subr.mxu0 0.0
    %1375 = vmatpush1.msra.mxu0 0.0
    %1376 = vmatprep.subr.mxu0 0.0
    %1377 = vmatpush1.msra.mxu0 0.0
    %1378 = vmatprep.subr.mxu0 0.0
    %1379 = vmatpush1.msra.mxu0 0.0
    %1380 = vmatprep.subr.mxu0 0.0
    %1381 = vmatpush1.msra.mxu0 0.0
    %1382 = vmatprep.subr.mxu0 0.0
    %1383 = vmatpush1.msra.mxu0 0.0
    %1384 = vmatprep.mubr.f32.mxu0 0.0
    %1385 = vmatmul.mubr.f32.gmra.mrb[0].mxu0 %v1318
    %v1386 = vpop.f32.mrb[0].mxu0
    %v1387 = vadd.f32 0.0, %v1386
    %v1388 = vpop.f32.mrb[0].mxu0
    %1389 = vdwg.mxu0
    %v1390 = vadd.f32 %v1010, %v1387
    %v1391 = vmul.f32 %v1390, 0.5
    %v1392 = vtanh.pop %v1391
    %v1393 = vmul.f32 %v1392, 0.5
    %v1394 = vadd.f32 %v1393, 0.5
    %v1395 = vtanh.pop %v1390
    %v1396 = vmul.f32 %v1394, %v1305
    %1398 = vrot.lane.b32.xlu0 %v1395, 64
    %v1399 = vpop.permute.xlu0 %1398
    %v1401 = vmul.f32 %v1394, %v1399
    %1403 = vrot.lane.b32.xlu0 %v1401, 32
    %v1404 = vpop.permute.xlu0 %1403
    %v1406 = vadd.f32 %v1396, %v1404
    %v1407 = vtanh.pop %v1406
    %1409 = vrot.lane.b32.xlu0 %v1407, 64
    %v1410 = vpop.permute.xlu0 %1409
    %v1412 = vmul.f32 %v1394, %v1410
    %1414 = vrot.lane.b32.xlu0 %v1412, 32
    %v1415 = vpop.permute.xlu0 %1414
    %s1417 = scalar_lea.vmem [#allocation2], 6
    %1418 = vst.msk [vmem:[%s1417] sm:$0x3] %vm1114, %v1415
    %v1419 = vsel %vm144, %v1415, 0
    %1421 = vmatprep.subr.mxu0 0.0
    %1422 = vmatpush1.msra.mxu0 %v1013
    %1423 = vmatprep.subr.mxu0 0.0
    %1424 = vmatpush1.msra.mxu0 %v1014
    %1425 = vmatprep.subr.mxu0 0.0
    %1426 = vmatpush1.msra.mxu0 %v1015
    %1427 = vmatprep.subr.mxu0 0.0
    %1428 = vmatpush1.msra.mxu0 %v1016
    %1429 = vmatprep.subr.mxu0 0.0
    %1430 = vmatpush1.msra.mxu0 0.0
    %1431 = vmatprep.subr.mxu0 0.0
    %1432 = vmatpush1.msra.mxu0 0.0
    %1433 = vmatprep.subr.mxu0 0.0
    %1434 = vmatpush1.msra.mxu0 0.0
    %1435 = vmatprep.subr.mxu0 0.0
    %1436 = vmatpush1.msra.mxu0 0.0
    %1437 = vmatprep.subr.mxu0 0.0
    %1438 = vmatpush1.msra.mxu0 0.0
    %1439 = vmatprep.subr.mxu0 0.0
    %1440 = vmatpush1.msra.mxu0 0.0
    %1441 = vmatprep.subr.mxu0 0.0
    %1442 = vmatpush1.msra.mxu0 0.0
    %1443 = vmatprep.subr.mxu0 0.0
    %1444 = vmatpush1.msra.mxu0 0.0
    %1445 = vmatprep.subr.mxu0 0.0
    %1446 = vmatpush1.msra.mxu0 0.0
    %1447 = vmatprep.subr.mxu0 0.0
    %1448 = vmatpush1.msra.mxu0 0.0
    %1449 = vmatprep.subr.mxu0 0.0
    %1450 = vmatpush1.msra.mxu0 0.0
    %1451 = vmatprep.subr.mxu0 0.0
    %1452 = vmatpush1.msra.mxu0 0.0
    %1453 = vmatprep.subr.mxu0 0.0
    %1454 = vmatpush1.msra.mxu0 0.0
    %1455 = vmatprep.subr.mxu0 0.0
    %1456 = vmatpush1.msra.mxu0 0.0
    %1457 = vmatprep.subr.mxu0 0.0
    %1458 = vmatpush1.msra.mxu0 0.0
    %1459 = vmatprep.subr.mxu0 0.0
    %1460 = vmatpush1.msra.mxu0 0.0
    %1461 = vmatprep.subr.mxu0 0.0
    %1462 = vmatpush1.msra.mxu0 0.0
    %1463 = vmatprep.subr.mxu0 0.0
    %1464 = vmatpush1.msra.mxu0 0.0
    %1465 = vmatprep.subr.mxu0 0.0
    %1466 = vmatpush1.msra.mxu0 0.0
    %1467 = vmatprep.subr.mxu0 0.0
    %1468 = vmatpush1.msra.mxu0 0.0
    %1469 = vmatprep.subr.mxu0 0.0
    %1470 = vmatpush1.msra.mxu0 0.0
    %1471 = vmatprep.subr.mxu0 0.0
    %1472 = vmatpush1.msra.mxu0 0.0
    %1473 = vmatprep.subr.mxu0 0.0
    %1474 = vmatpush1.msra.mxu0 0.0
    %1475 = vmatprep.subr.mxu0 0.0
    %1476 = vmatpush1.msra.mxu0 0.0
    %1477 = vmatprep.subr.mxu0 0.0
    %1478 = vmatpush1.msra.mxu0 0.0
    %1479 = vmatprep.subr.mxu0 0.0
    %1480 = vmatpush1.msra.mxu0 0.0
    %1481 = vmatprep.subr.mxu0 0.0
    %1482 = vmatpush1.msra.mxu0 0.0
    %1483 = vmatprep.subr.mxu0 0.0
    %1484 = vmatpush1.msra.mxu0 0.0
    %1485 = vmatprep.mubr.f32.mxu0 0.0
    %1486 = vmatmul.mubr.f32.gmra.mrb[0].mxu0 %v1419
    %v1487 = vpop.f32.mrb[0].mxu0
    %v1488 = vadd.f32 0.0, %v1487
    %v1489 = vpop.f32.mrb[0].mxu0
    %1490 = vdwg.mxu0
    %v1491 = vadd.f32 %v1010, %v1488
    %v1492 = vmul.f32 %v1491, 0.5
    %v1493 = vtanh.pop %v1492
    %v1494 = vmul.f32 %v1493, 0.5
    %v1495 = vadd.f32 %v1494, 0.5
    %v1496 = vtanh.pop %v1491
    %v1497 = vmul.f32 %v1495, %v1406
    %1499 = vrot.lane.b32.xlu0 %v1496, 64
    %v1500 = vpop.permute.xlu0 %1499
    %v1502 = vmul.f32 %v1495, %v1500
    %1504 = vrot.lane.b32.xlu0 %v1502, 32
    %v1505 = vpop.permute.xlu0 %1504
    %v1507 = vadd.f32 %v1497, %v1505
    %v1508 = vtanh.pop %v1507
    %1510 = vrot.lane.b32.xlu0 %v1508, 64
    %v1511 = vpop.permute.xlu0 %1510
    %v1513 = vmul.f32 %v1495, %v1511
    %1515 = vrot.lane.b32.xlu0 %v1513, 32
    %v1516 = vpop.permute.xlu0 %1515
    %s1518 = scalar_lea.vmem [#allocation2], 8
    %1519 = vst.msk [vmem:[%s1518] sm:$0x3] %vm1114, %v1516
    %v1520 = vsel %vm144, %v1516, 0
    %1522 = vmatprep.subr.mxu0 0.0
    %1523 = vmatpush1.msra.mxu0 %v1013
    %1524 = vmatprep.subr.mxu0 0.0
    %1525 = vmatpush1.msra.mxu0 %v1014
    %1526 = vmatprep.subr.mxu0 0.0
    %1527 = vmatpush1.msra.mxu0 %v1015
    %1528 = vmatprep.subr.mxu0 0.0
    %1529 = vmatpush1.msra.mxu0 %v1016
    %1530 = vmatprep.subr.mxu0 0.0
    %1531 = vmatpush1.msra.mxu0 0.0
    %1532 = vmatprep.subr.mxu0 0.0
    %1533 = vmatpush1.msra.mxu0 0.0
    %1534 = vmatprep.subr.mxu0 0.0
    %1535 = vmatpush1.msra.mxu0 0.0
    %1536 = vmatprep.subr.mxu0 0.0
    %1537 = vmatpush1.msra.mxu0 0.0
    %1538 = vmatprep.subr.mxu0 0.0
    %1539 = vmatpush1.msra.mxu0 0.0
    %1540 = vmatprep.subr.mxu0 0.0
    %1541 = vmatpush1.msra.mxu0 0.0
    %1542 = vmatprep.subr.mxu0 0.0
    %1543 = vmatpush1.msra.mxu0 0.0
    %1544 = vmatprep.subr.mxu0 0.0
    %1545 = vmatpush1.msra.mxu0 0.0
    %1546 = vmatprep.subr.mxu0 0.0
    %1547 = vmatpush1.msra.mxu0 0.0
    %1548 = vmatprep.subr.mxu0 0.0
    %1549 = vmatpush1.msra.mxu0 0.0
    %1550 = vmatprep.subr.mxu0 0.0
    %1551 = vmatpush1.msra.mxu0 0.0
    %1552 = vmatprep.subr.mxu0 0.0
    %1553 = vmatpush1.msra.mxu0 0.0
    %1554 = vmatprep.subr.mxu0 0.0
    %1555 = vmatpush1.msra.mxu0 0.0
    %1556 = vmatprep.subr.mxu0 0.0
    %1557 = vmatpush1.msra.mxu0 0.0
    %1558 = vmatprep.subr.mxu0 0.0
    %1559 = vmatpush1.msra.mxu0 0.0
    %1560 = vmatprep.subr.mxu0 0.0
    %1561 = vmatpush1.msra.mxu0 0.0
    %1562 = vmatprep.subr.mxu0 0.0
    %1563 = vmatpush1.msra.mxu0 0.0
    %1564 = vmatprep.subr.mxu0 0.0
    %1565 = vmatpush1.msra.mxu0 0.0
    %1566 = vmatprep.subr.mxu0 0.0
    %1567 = vmatpush1.msra.mxu0 0.0
    %1568 = vmatprep.subr.mxu0 0.0
    %1569 = vmatpush1.msra.mxu0 0.0
    %1570 = vmatprep.subr.mxu0 0.0
    %1571 = vmatpush1.msra.mxu0 0.0
    %1572 = vmatprep.subr.mxu0 0.0
    %1573 = vmatpush1.msra.mxu0 0.0
    %1574 = vmatprep.subr.mxu0 0.0
    %1575 = vmatpush1.msra.mxu0 0.0
    %1576 = vmatprep.subr.mxu0 0.0
    %1577 = vmatpush1.msra.mxu0 0.0
    %1578 = vmatprep.subr.mxu0 0.0
    %1579 = vmatpush1.msra.mxu0 0.0
    %1580 = vmatprep.subr.mxu0 0.0
    %1581 = vmatpush1.msra.mxu0 0.0
    %1582 = vmatprep.subr.mxu0 0.0
    %1583 = vmatpush1.msra.mxu0 0.0
    %1584 = vmatprep.subr.mxu0 0.0
    %1585 = vmatpush1.msra.mxu0 0.0
    %1586 = vmatprep.mubr.f32.mxu0 0.0
    %1587 = vmatmul.mubr.f32.gmra.mrb[0].mxu0 %v1520
    %v1588 = vpop.f32.mrb[0].mxu0
    %v1589 = vadd.f32 0.0, %v1588
    %v1590 = vpop.f32.mrb[0].mxu0
    %1591 = vdwg.mxu0
    %v1592 = vadd.f32 %v1010, %v1589
    %v1593 = vmul.f32 %v1592, 0.5
    %v1594 = vtanh.pop %v1593
    %v1595 = vmul.f32 %v1594, 0.5
    %v1596 = vadd.f32 %v1595, 0.5
    %v1597 = vtanh.pop %v1592
    %v1598 = vmul.f32 %v1596, %v1507
    %1600 = vrot.lane.b32.xlu0 %v1597, 64
    %v1601 = vpop.permute.xlu0 %1600
    %v1603 = vmul.f32 %v1596, %v1601
    %1605 = vrot.lane.b32.xlu0 %v1603, 32
    %v1606 = vpop.permute.xlu0 %1605
    %v1608 = vadd.f32 %v1598, %v1606
    %v1609 = vtanh.pop %v1608
    %1611 = vrot.lane.b32.xlu0 %v1609, 64
    %v1612 = vpop.permute.xlu0 %1611
    %v1614 = vmul.f32 %v1596, %v1612
    %1616 = vrot.lane.b32.xlu0 %v1614, 32
    %v1617 = vpop.permute.xlu0 %1616
    %s1619 = scalar_lea.vmem [#allocation2], 10
    %1620 = vst.msk [vmem:[%s1619] sm:$0x3] %vm1114, %v1617
    %v1621 = vsel %vm144, %v1617, 0
    %1623 = vmatprep.subr.mxu0 0.0
    %1624 = vmatpush1.msra.mxu0 %v1013
    %1625 = vmatprep.subr.mxu0 0.0
    %1626 = vmatpush1.msra.mxu0 %v1014
    %1627 = vmatprep.subr.mxu0 0.0
    %1628 = vmatpush1.msra.mxu0 %v1015
    %1629 = vmatprep.subr.mxu0 0.0
    %1630 = vmatpush1.msra.mxu0 %v1016
    %1631 = vmatprep.subr.mxu0 0.0
    %1632 = vmatpush1.msra.mxu0 0.0
    %1633 = vmatprep.subr.mxu0 0.0
    %1634 = vmatpush1.msra.mxu0 0.0
    %1635 = vmatprep.subr.mxu0 0.0
    %1636 = vmatpush1.msra.mxu0 0.0
    %1637 = vmatprep.subr.mxu0 0.0
    %1638 = vmatpush1.msra.mxu0 0.0
    %1639 = vmatprep.subr.mxu0 0.0
    %1640 = vmatpush1.msra.mxu0 0.0
    %1641 = vmatprep.subr.mxu0 0.0
    %1642 = vmatpush1.msra.mxu0 0.0
    %1643 = vmatprep.subr.mxu0 0.0
    %1644 = vmatpush1.msra.mxu0 0.0
    %1645 = vmatprep.subr.mxu0 0.0
    %1646 = vmatpush1.msra.mxu0 0.0
    %1647 = vmatprep.subr.mxu0 0.0
    %1648 = vmatpush1.msra.mxu0 0.0
    %1649 = vmatprep.subr.mxu0 0.0
    %1650 = vmatpush1.msra.mxu0 0.0
    %1651 = vmatprep.subr.mxu0 0.0
    %1652 = vmatpush1.msra.mxu0 0.0
    %1653 = vmatprep.subr.mxu0 0.0
    %1654 = vmatpush1.msra.mxu0 0.0
    %1655 = vmatprep.subr.mxu0 0.0
    %1656 = vmatpush1.msra.mxu0 0.0
    %1657 = vmatprep.subr.mxu0 0.0
    %1658 = vmatpush1.msra.mxu0 0.0
    %1659 = vmatprep.subr.mxu0 0.0
    %1660 = vmatpush1.msra.mxu0 0.0
    %1661 = vmatprep.subr.mxu0 0.0
    %1662 = vmatpush1.msra.mxu0 0.0
    %1663 = vmatprep.subr.mxu0 0.0
    %1664 = vmatpush1.msra.mxu0 0.0
    %1665 = vmatprep.subr.mxu0 0.0
    %1666 = vmatpush1.msra.mxu0 0.0
    %1667 = vmatprep.subr.mxu0 0.0
    %1668 = vmatpush1.msra.mxu0 0.0
    %1669 = vmatprep.subr.mxu0 0.0
    %1670 = vmatpush1.msra.mxu0 0.0
    %1671 = vmatprep.subr.mxu0 0.0
    %1672 = vmatpush1.msra.mxu0 0.0
    %1673 = vmatprep.subr.mxu0 0.0
    %1674 = vmatpush1.msra.mxu0 0.0
    %1675 = vmatprep.subr.mxu0 0.0
    %1676 = vmatpush1.msra.mxu0 0.0
    %1677 = vmatprep.subr.mxu0 0.0
    %1678 = vmatpush1.msra.mxu0 0.0
    %1679 = vmatprep.subr.mxu0 0.0
    %1680 = vmatpush1.msra.mxu0 0.0
    %1681 = vmatprep.subr.mxu0 0.0
    %1682 = vmatpush1.msra.mxu0 0.0
    %1683 = vmatprep.subr.mxu0 0.0
    %1684 = vmatpush1.msra.mxu0 0.0
    %1685 = vmatprep.subr.mxu0 0.0
    %1686 = vmatpush1.msra.mxu0 0.0
    %1687 = vmatprep.mubr.f32.mxu0 0.0
    %1688 = vmatmul.mubr.f32.gmra.mrb[0].mxu0 %v1621
    %v1689 = vpop.f32.mrb[0].mxu0
    %v1690 = vadd.f32 0.0, %v1689
    %v1691 = vpop.f32.mrb[0].mxu0
    %1692 = vdwg.mxu0
    %v1693 = vadd.f32 %v1010, %v1690
    %v1694 = vmul.f32 %v1693, 0.5
    %v1695 = vtanh.pop %v1694
    %v1696 = vmul.f32 %v1695, 0.5
    %v1697 = vadd.f32 %v1696, 0.5
    %v1698 = vtanh.pop %v1693
    %v1699 = vmul.f32 %v1697, %v1608
    %1701 = vrot.lane.b32.xlu0 %v1698, 64
    %v1702 = vpop.permute.xlu0 %1701
    %v1704 = vmul.f32 %v1697, %v1702
    %1706 = vrot.lane.b32.xlu0 %v1704, 32
    %v1707 = vpop.permute.xlu0 %1706
    %v1709 = vadd.f32 %v1699, %v1707
    %v1710 = vtanh.pop %v1709
    %1712 = vrot.lane.b32.xlu0 %v1710, 64
    %v1713 = vpop.permute.xlu0 %1712
    %v1715 = vmul.f32 %v1697, %v1713
    %1717 = vrot.lane.b32.xlu0 %v1715, 32
    %v1718 = vpop.permute.xlu0 %1717
    %s1720 = scalar_lea.vmem [#allocation2], 12
    %1721 = vst.msk [vmem:[%s1720] sm:$0x3] %vm1114, %v1718
    %v1722 = vsel %vm144, %v1718, 0
    %1724 = vmatprep.subr.mxu0 0.0
    %1725 = vmatpush1.msra.mxu0 %v1013
    %1726 = vmatprep.subr.mxu0 0.0
    %1727 = vmatpush1.msra.mxu0 %v1014
    %1728 = vmatprep.subr.mxu0 0.0
    %1729 = vmatpush1.msra.mxu0 %v1015
    %1730 = vmatprep.subr.mxu0 0.0
    %1731 = vmatpush1.msra.mxu0 %v1016
    %1732 = vmatprep.subr.mxu0 0.0
    %1733 = vmatpush1.msra.mxu0 0.0
    %1734 = vmatprep.subr.mxu0 0.0
    %1735 = vmatpush1.msra.mxu0 0.0
    %1736 = vmatprep.subr.mxu0 0.0
    %1737 = vmatpush1.msra.mxu0 0.0
    %1738 = vmatprep.subr.mxu0 0.0
    %1739 = vmatpush1.msra.mxu0 0.0
    %1740 = vmatprep.subr.mxu0 0.0
    %1741 = vmatpush1.msra.mxu0 0.0
    %1742 = vmatprep.subr.mxu0 0.0
    %1743 = vmatpush1.msra.mxu0 0.0
    %1744 = vmatprep.subr.mxu0 0.0
    %1745 = vmatpush1.msra.mxu0 0.0
    %1746 = vmatprep.subr.mxu0 0.0
    %1747 = vmatpush1.msra.mxu0 0.0
    %1748 = vmatprep.subr.mxu0 0.0
    %1749 = vmatpush1.msra.mxu0 0.0
    %1750 = vmatprep.subr.mxu0 0.0
    %1751 = vmatpush1.msra.mxu0 0.0
    %1752 = vmatprep.subr.mxu0 0.0
    %1753 = vmatpush1.msra.mxu0 0.0
    %1754 = vmatprep.subr.mxu0 0.0
    %1755 = vmatpush1.msra.mxu0 0.0
    %1756 = vmatprep.subr.mxu0 0.0
    %1757 = vmatpush1.msra.mxu0 0.0
    %1758 = vmatprep.subr.mxu0 0.0
    %1759 = vmatpush1.msra.mxu0 0.0
    %1760 = vmatprep.subr.mxu0 0.0
    %1761 = vmatpush1.msra.mxu0 0.0
    %1762 = vmatprep.subr.mxu0 0.0
    %1763 = vmatpush1.msra.mxu0 0.0
    %1764 = vmatprep.subr.mxu0 0.0
    %1765 = vmatpush1.msra.mxu0 0.0
    %1766 = vmatprep.subr.mxu0 0.0
    %1767 = vmatpush1.msra.mxu0 0.0
    %1768 = vmatprep.subr.mxu0 0.0
    %1769 = vmatpush1.msra.mxu0 0.0
    %1770 = vmatprep.subr.mxu0 0.0
    %1771 = vmatpush1.msra.mxu0 0.0
    %1772 = vmatprep.subr.mxu0 0.0
    %1773 = vmatpush1.msra.mxu0 0.0
    %1774 = vmatprep.subr.mxu0 0.0
    %1775 = vmatpush1.msra.mxu0 0.0
    %1776 = vmatprep.subr.mxu0 0.0
    %1777 = vmatpush1.msra.mxu0 0.0
    %1778 = vmatprep.subr.mxu0 0.0
    %1779 = vmatpush1.msra.mxu0 0.0
    %1780 = vmatprep.subr.mxu0 0.0
    %1781 = vmatpush1.msra.mxu0 0.0
    %1782 = vmatprep.subr.mxu0 0.0
    %1783 = vmatpush1.msra.mxu0 0.0
    %1784 = vmatprep.subr.mxu0 0.0
    %1785 = vmatpush1.msra.mxu0 0.0
    %1786 = vmatprep.subr.mxu0 0.0
    %1787 = vmatpush1.msra.mxu0 0.0
    %1788 = vmatprep.mubr.f32.mxu0 0.0
    %1789 = vmatmul.mubr.f32.gmra.mrb[0].mxu0 %v1722
    %v1790 = vpop.f32.mrb[0].mxu0
    %v1791 = vadd.f32 0.0, %v1790
    %v1792 = vpop.f32.mrb[0].mxu0
    %1793 = vdwg.mxu0
    %v1794 = vadd.f32 %v1010, %v1791
    %v1795 = vmul.f32 %v1794, 0.5
    %v1796 = vtanh.pop %v1795
    %v1797 = vmul.f32 %v1796, 0.5
    %v1798 = vadd.f32 %v1797, 0.5
    %v1799 = vtanh.pop %v1794
    %v1800 = vmul.f32 %v1798, %v1709
    %1802 = vrot.lane.b32.xlu0 %v1799, 64
    %v1803 = vpop.permute.xlu0 %1802
    %v1805 = vmul.f32 %v1798, %v1803
    %1807 = vrot.lane.b32.xlu0 %v1805, 32
    %v1808 = vpop.permute.xlu0 %1807
    %v1810 = vadd.f32 %v1800, %v1808
    %v1811 = vtanh.pop %v1810
    %1813 = vrot.lane.b32.xlu0 %v1811, 64
    %v1814 = vpop.permute.xlu0 %1813
    %v1816 = vmul.f32 %v1798, %v1814
    %1818 = vrot.lane.b32.xlu0 %v1816, 32
    %v1819 = vpop.permute.xlu0 %1818
    %s1821 = scalar_lea.vmem [#allocation2], 14
    %1822 = vst.msk [vmem:[%s1821] sm:$0x3] %vm1114, %v1819
    %v1823 = vld [vmem:[%s7] sm:$0x1]
    %v1824 = vld [vmem:[#allocation2] sm:$0x3]
    %v1825 = vld [vmem:[#allocation2 + $0x2] sm:$0x3]
    %v1826 = vld [vmem:[#allocation2 + $0x4] sm:$0x3]
    %v1827 = vld [vmem:[#allocation2 + $0x6] sm:$0x3]
    %v1828 = vld [vmem:[#allocation2 + $0x8] sm:$0x3]
    %v1829 = vld [vmem:[#allocation2 + $0xa] sm:$0x3]
    %v1830 = vld [vmem:[#allocation2 + $0xc] sm:$0x3]
    %v1831 = vld [vmem:[#allocation2 + $0xe] sm:$0x3]
    %v1833 = vlaneseq
    %v1834 = vshrl.u32 %v1833, 7
    %v1835 = vsub.s32 0, %v1834
    %v1836 = vrot.slane %v1823, %v1835
    %v1838 = vmul.f32 %v1824, %v1836
    %v1839 = vmul.f32 %v1825, %v1836
    %v1840 = vmul.f32 %v1826, %v1836
    %v1841 = vmul.f32 %v1827, %v1836
    %v1842 = vmul.f32 %v1828, %v1836
    %v1843 = vmul.f32 %v1829, %v1836
    %v1844 = vmul.f32 %v1830, %v1836
    %v1845 = vmul.f32 %v1831, %v1836
    %v1846 = vsel %vm1114, %v1838, 0.0
    %1847 = vadd.xlane.f32.xlu0 %v1846
    %v1848 = vpop.xlane.xlu0 %1847
    %v1849 = vsel %vm1114, %v1839, 0.0
    %1850 = vadd.xlane.f32.xlu0 %v1849
    %v1851 = vpop.xlane.xlu0 %1850
    %v1852 = vsel %vm1114, %v1840, 0.0
    %1853 = vadd.xlane.f32.xlu0 %v1852
    %v1854 = vpop.xlane.xlu0 %1853
    %v1855 = vsel %vm1114, %v1841, 0.0
    %1856 = vadd.xlane.f32.xlu0 %v1855
    %v1857 = vpop.xlane.xlu0 %1856
    %v1858 = vsel %vm1114, %v1842, 0.0
    %1859 = vadd.xlane.f32.xlu0 %v1858
    %v1860 = vpop.xlane.xlu0 %1859
    %v1861 = vsel %vm1114, %v1843, 0.0
    %1862 = vadd.xlane.f32.xlu0 %v1861
    %v1863 = vpop.xlane.xlu0 %1862
    %v1864 = vsel %vm1114, %v1844, 0.0
    %1865 = vadd.xlane.f32.xlu0 %v1864
    %v1866 = vpop.xlane.xlu0 %1865
    %v1867 = vsel %vm1114, %v1845, 0.0
    %1868 = vadd.xlane.f32.xlu0 %v1867
    %v1869 = vpop.xlane.xlu0 %1868
    %v1870 = vld [vmem:[#allocation3] sm:$0x1]
    %v1872 = vlaneseq
    %v1873 = vshrl.u32 %v1872, 7
    %v1874 = vsub.s32 0, %v1873
    %v1875 = vrot.slane %v1870, %v1874
    %v1877 = vadd.f32 %v1848, %v1875
    %v1878 = vadd.f32 %v1851, %v1875
    %v1879 = vadd.f32 %v1854, %v1875
    %v1880 = vadd.f32 %v1857, %v1875
    %v1881 = vadd.f32 %v1860, %v1875
    %v1882 = vadd.f32 %v1863, %v1875
    %v1883 = vadd.f32 %v1866, %v1875
    %v1884 = vadd.f32 %v1869, %v1875
    %vm1885 = vcmask 1024
    %1886 = vst.msk [vmem:[%s9] sm:$0x3] %vm1885, %v1877
    %1887 = vst.msk [vmem:[%s9 + $0x2] sm:$0x3] %vm1885, %v1878
    %1888 = vst.msk [vmem:[%s9 + $0x4] sm:$0x3] %vm1885, %v1879
    %1889 = vst.msk [vmem:[%s9 + $0x6] sm:$0x3] %vm1885, %v1880
    %1890 = vst.msk [vmem:[%s9 + $0x8] sm:$0x3] %vm1885, %v1881
    %1891 = vst.msk [vmem:[%s9 + $0xa] sm:$0x3] %vm1885, %v1882
    %1892 = vst.msk [vmem:[%s9 + $0xc] sm:$0x3] %vm1885, %v1883
    %1893 = vst.msk [vmem:[%s9 + $0xe] sm:$0x3] %vm1885, %v1884
    // Predicated region
    $region46: #{predictor_forward.1} parent=1 // pred_check
      _
    $region47: #{predictor_forward.1} parent=1 // pred_check_branch
      %1895 = sbr.rel (0) target = $region49
    $region48: #{predictor_forward.1} parent=1 // pred_region
      _
    $region49: #{predictor_forward.1} parent=1 // pred_fallthru
      _
    // Predicated region
    $region50: #{predictor_forward.1} parent=1 // pred_check
      _
    $region51: #{predictor_forward.1} parent=1 // pred_check_branch
      %1897 = sbr.rel (0) target = $region53
    $region52: #{predictor_forward.1} parent=1 // pred_region
      _
    $region53: #{predictor_forward.1} parent=1 // pred_fallthru
      _
    %1898 = vsyncpa [#allocation5], 1
    %1899 = vsyncpa [#allocation7], 1

</llo_original>
